<compile_context>
chip_gen: v5e
topology: v5e:2x2
jax: 0.10.0
libtpu: 0.0.40
codegen_flags: <defaults>
</compile_context>

<pallas_src>
import jax
import jax.numpy as jnp
from jax import lax
from jax.experimental import pallas as pl
from jax.experimental.pallas import tpu as pltpu

VOCAB = 10000
EMBED = 256
B_TILE = 8  # batch rows per grid step (one full sublane tile)


def _reward_kernel(ids_ref, emb_ref, w_ref, b_ref, out_ref):
    # ids_ref: (B_pad, S) int32 in SMEM (scalar prefetch)
    # emb_ref: (VOCAB, EMBED) f32, whole embedding table resident in VMEM
    # w_ref  : (EMBED, 1)   f32 fc weight (transposed in the wrapper)
    # b_ref  : (1, 1)       f32 fc bias in SMEM
    # out_ref: (B_TILE, 1)  f32 scores for this batch tile
    bt = pl.program_id(0)
    b0 = bt * B_TILE
    seq_len = ids_ref.shape[1]

    def s_body(s, acc):
        # Gather the B_TILE embedding rows for token position s and accumulate
        # them as one dense (B_TILE, EMBED) block (full sublane utilization).
        rows = jnp.concatenate(
            [emb_ref[pl.ds(ids_ref[b0 + i, s], 1), :] for i in range(B_TILE)],
            axis=0)
        return acc + rows

    acc = lax.fori_loop(
        0, seq_len, s_body,
        jnp.zeros((B_TILE, EMBED), jnp.float32),
        unroll=(seq_len <= 16))

    mean = acc * jnp.float32(1.0 / seq_len)                         # (B_TILE, E)
    score = jnp.dot(mean, w_ref[...], preferred_element_type=jnp.float32)
    out_ref[...] = (score + b_ref[0, 0]).astype(out_ref.dtype)


def reward_model_forward(response_ids, emb_table, fc_w, fc_b):
    """response_ids: (B, S) integer token ids; returns (B, 1) f32 scores."""
    B, S = response_ids.shape
    n_tiles = pl.cdiv(B, B_TILE)
    B_pad = n_tiles * B_TILE

    # Pad the batch up to a multiple of the tile (pad rows use token 0; their
    # scores are computed and sliced away in the wrapper).
    ids = jnp.zeros((B_pad, S), jnp.int32).at[:B].set(
        response_ids.astype(jnp.int32))
    w_t = fc_w.reshape(1, EMBED).T.astype(jnp.float32)              # (EMBED, 1)
    bias = fc_b.reshape(1, 1).astype(jnp.float32)

    grid_spec = pltpu.PrefetchScalarGridSpec(
        num_scalar_prefetch=1,                 # token ids -> SMEM
        grid=(n_tiles,),
        in_specs=[
            # Whole embedding table resident in VMEM (single bulk copy, no
            # double-buffering).  TODO(synk): store the table as bf16 for
            # extra VMEM headroom on v5e/v7x if vocab/embed grow.
            pl.BlockSpec(memory_space=pltpu.MemorySpace.VMEM),
            # fc weight: constant block index -> stays resident across grid.
            pl.BlockSpec((EMBED, 1), lambda bt, ids: (0, 0)),
            # fc bias: 32-bit scalar in SMEM.
            pl.BlockSpec(memory_space=pltpu.MemorySpace.SMEM),
        ],
        out_specs=pl.BlockSpec((B_TILE, 1), lambda bt, ids: (bt, 0)),
    )

    out = pl.pallas_call(
        _reward_kernel,
        out_shape=jax.ShapeDtypeStruct((B_pad, 1), jnp.float32),
        grid_spec=grid_spec,
        compiler_params=pltpu.CompilerParams(
            dimension_semantics=("parallel",),
            # Room for the 10.24 MiB resident table + buffers on all
            # generations (v5e's default scoped-VMEM limit is only 16 MiB;
            # 48 MiB is below v7x's 64 MiB physical VMEM).
            vmem_limit_bytes=48 * 1024 * 1024),
    )(ids, emb_table.astype(jnp.float32), w_t, bias)
    return out[:B]


if __name__ == "__main__":
    key = jax.random.PRNGKey(0)
    k_tab, k_w, k_b, k_ids = jax.random.split(key, 4)

    # Deterministic parameter init (shapes per the PyTorch module __init__).
    emb_table = jax.random.normal(k_tab, (VOCAB, EMBED), dtype=jnp.float32)
    fc_w = (jax.random.normal(k_w, (1, EMBED), dtype=jnp.float32)
            / jnp.sqrt(jnp.float32(EMBED)))
    fc_b = jax.random.normal(k_b, (1,), dtype=jnp.float32) * 0.01

    # Small example input: batch=2, seq=8 token ids.
    B, S = 2, 8
    response = jax.random.randint(k_ids, (B, S), 0, VOCAB, dtype=jnp.int32)

    score = reward_model_forward(response, emb_table, fc_w, fc_b)
    score = jax.block_until_ready(score)

    # Pure-JAX reference check.
    ref = emb_table[response].mean(axis=1) @ fc_w.T + fc_b
    assert score.shape == (B, 1)
    assert jnp.allclose(score, ref, atol=1e-4, rtol=1e-4), (score, ref)

    print("KERNEL_OK")
</pallas_src>

<mosaic_0001>
module attributes {stable_mosaic.version = 11 : i64} {
  func.func @_reward_kernel(%arg0: i32, %arg1: memref<8x8xi32, #tpu.memory_space<smem>>, %arg2: memref<10000x256xf32, #tpu.memory_space<vmem>>, %arg3: memref<256x1xf32, #tpu.memory_space<vmem>>, %arg4: memref<1x1xf32, #tpu.memory_space<smem>>, %arg5: memref<8x1xf32, #tpu.memory_space<vmem>>) attributes {dimension_semantics = [#tpu.dimension_semantics<parallel>], iteration_bounds = array<i64: 1>, scalar_prefetch = 1 : i64, scratch_operands = 0 : i64, tpu.core_type = #tpu.core_type<tc>, window_params = [{pipeline_mode = #tpu.pipeline_mode<synchronous>, transform_indices = @transform_0, window_bounds = array<i64: 10000, 256>}, {pipeline_mode = #tpu.pipeline_mode<synchronous>, transform_indices = @transform_1, window_bounds = array<i64: 256, 1>}, {transform_indices = @transform_2, window_bounds = array<i64: 1, 1>}, {transform_indices = @transform_3, window_bounds = array<i64: 8, 1>}]} {
    %c8_i32 = arith.constant 8 : i32
    %0 = arith.muli %arg0, %c8_i32 : i32
    %cst = arith.constant 0.000000e+00 : f32
    %1 = vector.broadcast %cst : f32 to vector<8x256xf32>
    %c0_i32 = arith.constant 0 : i32
    %c0_i32_0 = arith.constant 0 : i32
    %2 = arith.addi %0, %c0_i32_0 : i32
    %3 = arith.index_cast %2 : i32 to index
    %4 = arith.index_cast %c0_i32 : i32 to index
    %5 = memref.load %arg1[%3, %4] : memref<8x8xi32, #tpu.memory_space<smem>>
    %6 = arith.index_cast %5 : i32 to index
    %c0 = arith.constant 0 : index
    %7 = vector.load %arg2[%6, %c0] : memref<10000x256xf32, #tpu.memory_space<vmem>>, vector<1x256xf32>
    %c1_i32 = arith.constant 1 : i32
    %8 = arith.addi %0, %c1_i32 : i32
    %9 = arith.index_cast %8 : i32 to index
    %10 = arith.index_cast %c0_i32 : i32 to index
    %11 = memref.load %arg1[%9, %10] : memref<8x8xi32, #tpu.memory_space<smem>>
    %12 = arith.index_cast %11 : i32 to index
    %c0_1 = arith.constant 0 : index
    %13 = vector.load %arg2[%12, %c0_1] : memref<10000x256xf32, #tpu.memory_space<vmem>>, vector<1x256xf32>
    %c2_i32 = arith.constant 2 : i32
    %14 = arith.addi %0, %c2_i32 : i32
    %15 = arith.index_cast %14 : i32 to index
    %16 = arith.index_cast %c0_i32 : i32 to index
    %17 = memref.load %arg1[%15, %16] : memref<8x8xi32, #tpu.memory_space<smem>>
    %18 = arith.index_cast %17 : i32 to index
    %c0_2 = arith.constant 0 : index
    %19 = vector.load %arg2[%18, %c0_2] : memref<10000x256xf32, #tpu.memory_space<vmem>>, vector<1x256xf32>
    %c3_i32 = arith.constant 3 : i32
    %20 = arith.addi %0, %c3_i32 : i32
    %21 = arith.index_cast %20 : i32 to index
    %22 = arith.index_cast %c0_i32 : i32 to index
    %23 = memref.load %arg1[%21, %22] : memref<8x8xi32, #tpu.memory_space<smem>>
    %24 = arith.index_cast %23 : i32 to index
    %c0_3 = arith.constant 0 : index
    %25 = vector.load %arg2[%24, %c0_3] : memref<10000x256xf32, #tpu.memory_space<vmem>>, vector<1x256xf32>
    %c4_i32 = arith.constant 4 : i32
    %26 = arith.addi %0, %c4_i32 : i32
    %27 = arith.index_cast %26 : i32 to index
    %28 = arith.index_cast %c0_i32 : i32 to index
    %29 = memref.load %arg1[%27, %28] : memref<8x8xi32, #tpu.memory_space<smem>>
    %30 = arith.index_cast %29 : i32 to index
    %c0_4 = arith.constant 0 : index
    %31 = vector.load %arg2[%30, %c0_4] : memref<10000x256xf32, #tpu.memory_space<vmem>>, vector<1x256xf32>
    %c5_i32 = arith.constant 5 : i32
    %32 = arith.addi %0, %c5_i32 : i32
    %33 = arith.index_cast %32 : i32 to index
    %34 = arith.index_cast %c0_i32 : i32 to index
    %35 = memref.load %arg1[%33, %34] : memref<8x8xi32, #tpu.memory_space<smem>>
    %36 = arith.index_cast %35 : i32 to index
    %c0_5 = arith.constant 0 : index
    %37 = vector.load %arg2[%36, %c0_5] : memref<10000x256xf32, #tpu.memory_space<vmem>>, vector<1x256xf32>
    %c6_i32 = arith.constant 6 : i32
    %38 = arith.addi %0, %c6_i32 : i32
    %39 = arith.index_cast %38 : i32 to index
    %40 = arith.index_cast %c0_i32 : i32 to index
    %41 = memref.load %arg1[%39, %40] : memref<8x8xi32, #tpu.memory_space<smem>>
    %42 = arith.index_cast %41 : i32 to index
    %c0_6 = arith.constant 0 : index
    %43 = vector.load %arg2[%42, %c0_6] : memref<10000x256xf32, #tpu.memory_space<vmem>>, vector<1x256xf32>
    %c7_i32 = arith.constant 7 : i32
    %44 = arith.addi %0, %c7_i32 : i32
    %45 = arith.index_cast %44 : i32 to index
    %46 = arith.index_cast %c0_i32 : i32 to index
    %47 = memref.load %arg1[%45, %46] : memref<8x8xi32, #tpu.memory_space<smem>>
    %48 = arith.index_cast %47 : i32 to index
    %c0_7 = arith.constant 0 : index
    %49 = vector.load %arg2[%48, %c0_7] : memref<10000x256xf32, #tpu.memory_space<vmem>>, vector<1x256xf32>
    %50 = tpu.concatenate %7, %13, %19, %25, %31, %37, %43, %49 in 0 : vector<1x256xf32>, vector<1x256xf32>, vector<1x256xf32>, vector<1x256xf32>, vector<1x256xf32>, vector<1x256xf32>, vector<1x256xf32>, vector<1x256xf32> -> vector<8x256xf32>
    %51 = arith.addf %1, %50 : vector<8x256xf32>
    %c1_i32_8 = arith.constant 1 : i32
    %c0_i32_9 = arith.constant 0 : i32
    %52 = arith.addi %0, %c0_i32_9 : i32
    %53 = arith.index_cast %52 : i32 to index
    %54 = arith.index_cast %c1_i32_8 : i32 to index
    %55 = memref.load %arg1[%53, %54] : memref<8x8xi32, #tpu.memory_space<smem>>
    %56 = arith.index_cast %55 : i32 to index
    %c0_10 = arith.constant 0 : index
    %57 = vector.load %arg2[%56, %c0_10] : memref<10000x256xf32, #tpu.memory_space<vmem>>, vector<1x256xf32>
    %c1_i32_11 = arith.constant 1 : i32
    %58 = arith.addi %0, %c1_i32_11 : i32
    %59 = arith.index_cast %58 : i32 to index
    %60 = arith.index_cast %c1_i32_8 : i32 to index
    %61 = memref.load %arg1[%59, %60] : memref<8x8xi32, #tpu.memory_space<smem>>
    %62 = arith.index_cast %61 : i32 to index
    %c0_12 = arith.constant 0 : index
    %63 = vector.load %arg2[%62, %c0_12] : memref<10000x256xf32, #tpu.memory_space<vmem>>, vector<1x256xf32>
    %c2_i32_13 = arith.constant 2 : i32
    %64 = arith.addi %0, %c2_i32_13 : i32
    %65 = arith.index_cast %64 : i32 to index
    %66 = arith.index_cast %c1_i32_8 : i32 to index
    %67 = memref.load %arg1[%65, %66] : memref<8x8xi32, #tpu.memory_space<smem>>
    %68 = arith.index_cast %67 : i32 to index
    %c0_14 = arith.constant 0 : index
    %69 = vector.load %arg2[%68, %c0_14] : memref<10000x256xf32, #tpu.memory_space<vmem>>, vector<1x256xf32>
    %c3_i32_15 = arith.constant 3 : i32
    %70 = arith.addi %0, %c3_i32_15 : i32
    %71 = arith.index_cast %70 : i32 to index
    %72 = arith.index_cast %c1_i32_8 : i32 to index
    %73 = memref.load %arg1[%71, %72] : memref<8x8xi32, #tpu.memory_space<smem>>
    %74 = arith.index_cast %73 : i32 to index
    %c0_16 = arith.constant 0 : index
    %75 = vector.load %arg2[%74, %c0_16] : memref<10000x256xf32, #tpu.memory_space<vmem>>, vector<1x256xf32>
    %c4_i32_17 = arith.constant 4 : i32
    %76 = arith.addi %0, %c4_i32_17 : i32
    %77 = arith.index_cast %76 : i32 to index
    %78 = arith.index_cast %c1_i32_8 : i32 to index
    %79 = memref.load %arg1[%77, %78] : memref<8x8xi32, #tpu.memory_space<smem>>
    %80 = arith.index_cast %79 : i32 to index
    %c0_18 = arith.constant 0 : index
    %81 = vector.load %arg2[%80, %c0_18] : memref<10000x256xf32, #tpu.memory_space<vmem>>, vector<1x256xf32>
    %c5_i32_19 = arith.constant 5 : i32
    %82 = arith.addi %0, %c5_i32_19 : i32
    %83 = arith.index_cast %82 : i32 to index
    %84 = arith.index_cast %c1_i32_8 : i32 to index
    %85 = memref.load %arg1[%83, %84] : memref<8x8xi32, #tpu.memory_space<smem>>
    %86 = arith.index_cast %85 : i32 to index
    %c0_20 = arith.constant 0 : index
    %87 = vector.load %arg2[%86, %c0_20] : memref<10000x256xf32, #tpu.memory_space<vmem>>, vector<1x256xf32>
    %c6_i32_21 = arith.constant 6 : i32
    %88 = arith.addi %0, %c6_i32_21 : i32
    %89 = arith.index_cast %88 : i32 to index
    %90 = arith.index_cast %c1_i32_8 : i32 to index
    %91 = memref.load %arg1[%89, %90] : memref<8x8xi32, #tpu.memory_space<smem>>
    %92 = arith.index_cast %91 : i32 to index
    %c0_22 = arith.constant 0 : index
    %93 = vector.load %arg2[%92, %c0_22] : memref<10000x256xf32, #tpu.memory_space<vmem>>, vector<1x256xf32>
    %c7_i32_23 = arith.constant 7 : i32
    %94 = arith.addi %0, %c7_i32_23 : i32
    %95 = arith.index_cast %94 : i32 to index
    %96 = arith.index_cast %c1_i32_8 : i32 to index
    %97 = memref.load %arg1[%95, %96] : memref<8x8xi32, #tpu.memory_space<smem>>
    %98 = arith.index_cast %97 : i32 to index
    %c0_24 = arith.constant 0 : index
    %99 = vector.load %arg2[%98, %c0_24] : memref<10000x256xf32, #tpu.memory_space<vmem>>, vector<1x256xf32>
    %100 = tpu.concatenate %57, %63, %69, %75, %81, %87, %93, %99 in 0 : vector<1x256xf32>, vector<1x256xf32>, vector<1x256xf32>, vector<1x256xf32>, vector<1x256xf32>, vector<1x256xf32>, vector<1x256xf32>, vector<1x256xf32> -> vector<8x256xf32>
    %101 = arith.addf %51, %100 : vector<8x256xf32>
    %c2_i32_25 = arith.constant 2 : i32
    %c0_i32_26 = arith.constant 0 : i32
    %102 = arith.addi %0, %c0_i32_26 : i32
    %103 = arith.index_cast %102 : i32 to index
    %104 = arith.index_cast %c2_i32_25 : i32 to index
    %105 = memref.load %arg1[%103, %104] : memref<8x8xi32, #tpu.memory_space<smem>>
    %106 = arith.index_cast %105 : i32 to index
    %c0_27 = arith.constant 0 : index
    %107 = vector.load %arg2[%106, %c0_27] : memref<10000x256xf32, #tpu.memory_space<vmem>>, vector<1x256xf32>
    %c1_i32_28 = arith.constant 1 : i32
    %108 = arith.addi %0, %c1_i32_28 : i32
    %109 = arith.index_cast %108 : i32 to index
    %110 = arith.index_cast %c2_i32_25 : i32 to index
    %111 = memref.load %arg1[%109, %110] : memref<8x8xi32, #tpu.memory_space<smem>>
    %112 = arith.index_cast %111 : i32 to index
    %c0_29 = arith.constant 0 : index
    %113 = vector.load %arg2[%112, %c0_29] : memref<10000x256xf32, #tpu.memory_space<vmem>>, vector<1x256xf32>
    %c2_i32_30 = arith.constant 2 : i32
    %114 = arith.addi %0, %c2_i32_30 : i32
    %115 = arith.index_cast %114 : i32 to index
    %116 = arith.index_cast %c2_i32_25 : i32 to index
    %117 = memref.load %arg1[%115, %116] : memref<8x8xi32, #tpu.memory_space<smem>>
    %118 = arith.index_cast %117 : i32 to index
    %c0_31 = arith.constant 0 : index
    %119 = vector.load %arg2[%118, %c0_31] : memref<10000x256xf32, #tpu.memory_space<vmem>>, vector<1x256xf32>
    %c3_i32_32 = arith.constant 3 : i32
    %120 = arith.addi %0, %c3_i32_32 : i32
    %121 = arith.index_cast %120 : i32 to index
    %122 = arith.index_cast %c2_i32_25 : i32 to index
    %123 = memref.load %arg1[%121, %122] : memref<8x8xi32, #tpu.memory_space<smem>>
    %124 = arith.index_cast %123 : i32 to index
    %c0_33 = arith.constant 0 : index
    %125 = vector.load %arg2[%124, %c0_33] : memref<10000x256xf32, #tpu.memory_space<vmem>>, vector<1x256xf32>
    %c4_i32_34 = arith.constant 4 : i32
    %126 = arith.addi %0, %c4_i32_34 : i32
    %127 = arith.index_cast %126 : i32 to index
    %128 = arith.index_cast %c2_i32_25 : i32 to index
    %129 = memref.load %arg1[%127, %128] : memref<8x8xi32, #tpu.memory_space<smem>>
    %130 = arith.index_cast %129 : i32 to index
    %c0_35 = arith.constant 0 : index
    %131 = vector.load %arg2[%130, %c0_35] : memref<10000x256xf32, #tpu.memory_space<vmem>>, vector<1x256xf32>
    %c5_i32_36 = arith.constant 5 : i32
    %132 = arith.addi %0, %c5_i32_36 : i32
    %133 = arith.index_cast %132 : i32 to index
    %134 = arith.index_cast %c2_i32_25 : i32 to index
    %135 = memref.load %arg1[%133, %134] : memref<8x8xi32, #tpu.memory_space<smem>>
    %136 = arith.index_cast %135 : i32 to index
    %c0_37 = arith.constant 0 : index
    %137 = vector.load %arg2[%136, %c0_37] : memref<10000x256xf32, #tpu.memory_space<vmem>>, vector<1x256xf32>
    %c6_i32_38 = arith.constant 6 : i32
    %138 = arith.addi %0, %c6_i32_38 : i32
    %139 = arith.index_cast %138 : i32 to index
    %140 = arith.index_cast %c2_i32_25 : i32 to index
    %141 = memref.load %arg1[%139, %140] : memref<8x8xi32, #tpu.memory_space<smem>>
    %142 = arith.index_cast %141 : i32 to index
    %c0_39 = arith.constant 0 : index
    %143 = vector.load %arg2[%142, %c0_39] : memref<10000x256xf32, #tpu.memory_space<vmem>>, vector<1x256xf32>
    %c7_i32_40 = arith.constant 7 : i32
    %144 = arith.addi %0, %c7_i32_40 : i32
    %145 = arith.index_cast %144 : i32 to index
    %146 = arith.index_cast %c2_i32_25 : i32 to index
    %147 = memref.load %arg1[%145, %146] : memref<8x8xi32, #tpu.memory_space<smem>>
    %148 = arith.index_cast %147 : i32 to index
    %c0_41 = arith.constant 0 : index
    %149 = vector.load %arg2[%148, %c0_41] : memref<10000x256xf32, #tpu.memory_space<vmem>>, vector<1x256xf32>
    %150 = tpu.concatenate %107, %113, %119, %125, %131, %137, %143, %149 in 0 : vector<1x256xf32>, vector<1x256xf32>, vector<1x256xf32>, vector<1x256xf32>, vector<1x256xf32>, vector<1x256xf32>, vector<1x256xf32>, vector<1x256xf32> -> vector<8x256xf32>
    %151 = arith.addf %101, %150 : vector<8x256xf32>
    %c3_i32_42 = arith.constant 3 : i32
    %c0_i32_43 = arith.constant 0 : i32
    %152 = arith.addi %0, %c0_i32_43 : i32
    %153 = arith.index_cast %152 : i32 to index
    %154 = arith.index_cast %c3_i32_42 : i32 to index
    %155 = memref.load %arg1[%153, %154] : memref<8x8xi32, #tpu.memory_space<smem>>
    %156 = arith.index_cast %155 : i32 to index
    %c0_44 = arith.constant 0 : index
    %157 = vector.load %arg2[%156, %c0_44] : memref<10000x256xf32, #tpu.memory_space<vmem>>, vector<1x256xf32>
    %c1_i32_45 = arith.constant 1 : i32
    %158 = arith.addi %0, %c1_i32_45 : i32
    %159 = arith.index_cast %158 : i32 to index
    %160 = arith.index_cast %c3_i32_42 : i32 to index
    %161 = memref.load %arg1[%159, %160] : memref<8x8xi32, #tpu.memory_space<smem>>
    %162 = arith.index_cast %161 : i32 to index
    %c0_46 = arith.constant 0 : index
    %163 = vector.load %arg2[%162, %c0_46] : memref<10000x256xf32, #tpu.memory_space<vmem>>, vector<1x256xf32>
    %c2_i32_47 = arith.constant 2 : i32
    %164 = arith.addi %0, %c2_i32_47 : i32
    %165 = arith.index_cast %164 : i32 to index
    %166 = arith.index_cast %c3_i32_42 : i32 to index
    %167 = memref.load %arg1[%165, %166] : memref<8x8xi32, #tpu.memory_space<smem>>
    %168 = arith.index_cast %167 : i32 to index
    %c0_48 = arith.constant 0 : index
    %169 = vector.load %arg2[%168, %c0_48] : memref<10000x256xf32, #tpu.memory_space<vmem>>, vector<1x256xf32>
    %c3_i32_49 = arith.constant 3 : i32
    %170 = arith.addi %0, %c3_i32_49 : i32
    %171 = arith.index_cast %170 : i32 to index
    %172 = arith.index_cast %c3_i32_42 : i32 to index
    %173 = memref.load %arg1[%171, %172] : memref<8x8xi32, #tpu.memory_space<smem>>
    %174 = arith.index_cast %173 : i32 to index
    %c0_50 = arith.constant 0 : index
    %175 = vector.load %arg2[%174, %c0_50] : memref<10000x256xf32, #tpu.memory_space<vmem>>, vector<1x256xf32>
    %c4_i32_51 = arith.constant 4 : i32
    %176 = arith.addi %0, %c4_i32_51 : i32
    %177 = arith.index_cast %176 : i32 to index
    %178 = arith.index_cast %c3_i32_42 : i32 to index
    %179 = memref.load %arg1[%177, %178] : memref<8x8xi32, #tpu.memory_space<smem>>
    %180 = arith.index_cast %179 : i32 to index
    %c0_52 = arith.constant 0 : index
    %181 = vector.load %arg2[%180, %c0_52] : memref<10000x256xf32, #tpu.memory_space<vmem>>, vector<1x256xf32>
    %c5_i32_53 = arith.constant 5 : i32
    %182 = arith.addi %0, %c5_i32_53 : i32
    %183 = arith.index_cast %182 : i32 to index
    %184 = arith.index_cast %c3_i32_42 : i32 to index
    %185 = memref.load %arg1[%183, %184] : memref<8x8xi32, #tpu.memory_space<smem>>
    %186 = arith.index_cast %185 : i32 to index
    %c0_54 = arith.constant 0 : index
    %187 = vector.load %arg2[%186, %c0_54] : memref<10000x256xf32, #tpu.memory_space<vmem>>, vector<1x256xf32>
    %c6_i32_55 = arith.constant 6 : i32
    %188 = arith.addi %0, %c6_i32_55 : i32
    %189 = arith.index_cast %188 : i32 to index
    %190 = arith.index_cast %c3_i32_42 : i32 to index
    %191 = memref.load %arg1[%189, %190] : memref<8x8xi32, #tpu.memory_space<smem>>
    %192 = arith.index_cast %191 : i32 to index
    %c0_56 = arith.constant 0 : index
    %193 = vector.load %arg2[%192, %c0_56] : memref<10000x256xf32, #tpu.memory_space<vmem>>, vector<1x256xf32>
    %c7_i32_57 = arith.constant 7 : i32
    %194 = arith.addi %0, %c7_i32_57 : i32
    %195 = arith.index_cast %194 : i32 to index
    %196 = arith.index_cast %c3_i32_42 : i32 to index
    %197 = memref.load %arg1[%195, %196] : memref<8x8xi32, #tpu.memory_space<smem>>
    %198 = arith.index_cast %197 : i32 to index
    %c0_58 = arith.constant 0 : index
    %199 = vector.load %arg2[%198, %c0_58] : memref<10000x256xf32, #tpu.memory_space<vmem>>, vector<1x256xf32>
    %200 = tpu.concatenate %157, %163, %169, %175, %181, %187, %193, %199 in 0 : vector<1x256xf32>, vector<1x256xf32>, vector<1x256xf32>, vector<1x256xf32>, vector<1x256xf32>, vector<1x256xf32>, vector<1x256xf32>, vector<1x256xf32> -> vector<8x256xf32>
    %201 = arith.addf %151, %200 : vector<8x256xf32>
    %c4_i32_59 = arith.constant 4 : i32
    %c0_i32_60 = arith.constant 0 : i32
    %202 = arith.addi %0, %c0_i32_60 : i32
    %203 = arith.index_cast %202 : i32 to index
    %204 = arith.index_cast %c4_i32_59 : i32 to index
    %205 = memref.load %arg1[%203, %204] : memref<8x8xi32, #tpu.memory_space<smem>>
    %206 = arith.index_cast %205 : i32 to index
    %c0_61 = arith.constant 0 : index
    %207 = vector.load %arg2[%206, %c0_61] : memref<10000x256xf32, #tpu.memory_space<vmem>>, vector<1x256xf32>
    %c1_i32_62 = arith.constant 1 : i32
    %208 = arith.addi %0, %c1_i32_62 : i32
    %209 = arith.index_cast %208 : i32 to index
    %210 = arith.index_cast %c4_i32_59 : i32 to index
    %211 = memref.load %arg1[%209, %210] : memref<8x8xi32, #tpu.memory_space<smem>>
    %212 = arith.index_cast %211 : i32 to index
    %c0_63 = arith.constant 0 : index
    %213 = vector.load %arg2[%212, %c0_63] : memref<10000x256xf32, #tpu.memory_space<vmem>>, vector<1x256xf32>
    %c2_i32_64 = arith.constant 2 : i32
    %214 = arith.addi %0, %c2_i32_64 : i32
    %215 = arith.index_cast %214 : i32 to index
    %216 = arith.index_cast %c4_i32_59 : i32 to index
    %217 = memref.load %arg1[%215, %216] : memref<8x8xi32, #tpu.memory_space<smem>>
    %218 = arith.index_cast %217 : i32 to index
    %c0_65 = arith.constant 0 : index
    %219 = vector.load %arg2[%218, %c0_65] : memref<10000x256xf32, #tpu.memory_space<vmem>>, vector<1x256xf32>
    %c3_i32_66 = arith.constant 3 : i32
    %220 = arith.addi %0, %c3_i32_66 : i32
    %221 = arith.index_cast %220 : i32 to index
    %222 = arith.index_cast %c4_i32_59 : i32 to index
    %223 = memref.load %arg1[%221, %222] : memref<8x8xi32, #tpu.memory_space<smem>>
    %224 = arith.index_cast %223 : i32 to index
    %c0_67 = arith.constant 0 : index
    %225 = vector.load %arg2[%224, %c0_67] : memref<10000x256xf32, #tpu.memory_space<vmem>>, vector<1x256xf32>
    %c4_i32_68 = arith.constant 4 : i32
    %226 = arith.addi %0, %c4_i32_68 : i32
    %227 = arith.index_cast %226 : i32 to index
    %228 = arith.index_cast %c4_i32_59 : i32 to index
    %229 = memref.load %arg1[%227, %228] : memref<8x8xi32, #tpu.memory_space<smem>>
    %230 = arith.index_cast %229 : i32 to index
    %c0_69 = arith.constant 0 : index
    %231 = vector.load %arg2[%230, %c0_69] : memref<10000x256xf32, #tpu.memory_space<vmem>>, vector<1x256xf32>
    %c5_i32_70 = arith.constant 5 : i32
    %232 = arith.addi %0, %c5_i32_70 : i32
    %233 = arith.index_cast %232 : i32 to index
    %234 = arith.index_cast %c4_i32_59 : i32 to index
    %235 = memref.load %arg1[%233, %234] : memref<8x8xi32, #tpu.memory_space<smem>>
    %236 = arith.index_cast %235 : i32 to index
    %c0_71 = arith.constant 0 : index
    %237 = vector.load %arg2[%236, %c0_71] : memref<10000x256xf32, #tpu.memory_space<vmem>>, vector<1x256xf32>
    %c6_i32_72 = arith.constant 6 : i32
    %238 = arith.addi %0, %c6_i32_72 : i32
    %239 = arith.index_cast %238 : i32 to index
    %240 = arith.index_cast %c4_i32_59 : i32 to index
    %241 = memref.load %arg1[%239, %240] : memref<8x8xi32, #tpu.memory_space<smem>>
    %242 = arith.index_cast %241 : i32 to index
    %c0_73 = arith.constant 0 : index
    %243 = vector.load %arg2[%242, %c0_73] : memref<10000x256xf32, #tpu.memory_space<vmem>>, vector<1x256xf32>
    %c7_i32_74 = arith.constant 7 : i32
    %244 = arith.addi %0, %c7_i32_74 : i32
    %245 = arith.index_cast %244 : i32 to index
    %246 = arith.index_cast %c4_i32_59 : i32 to index
    %247 = memref.load %arg1[%245, %246] : memref<8x8xi32, #tpu.memory_space<smem>>
    %248 = arith.index_cast %247 : i32 to index
    %c0_75 = arith.constant 0 : index
    %249 = vector.load %arg2[%248, %c0_75] : memref<10000x256xf32, #tpu.memory_space<vmem>>, vector<1x256xf32>
    %250 = tpu.concatenate %207, %213, %219, %225, %231, %237, %243, %249 in 0 : vector<1x256xf32>, vector<1x256xf32>, vector<1x256xf32>, vector<1x256xf32>, vector<1x256xf32>, vector<1x256xf32>, vector<1x256xf32>, vector<1x256xf32> -> vector<8x256xf32>
    %251 = arith.addf %201, %250 : vector<8x256xf32>
    %c5_i32_76 = arith.constant 5 : i32
    %c0_i32_77 = arith.constant 0 : i32
    %252 = arith.addi %0, %c0_i32_77 : i32
    %253 = arith.index_cast %252 : i32 to index
    %254 = arith.index_cast %c5_i32_76 : i32 to index
    %255 = memref.load %arg1[%253, %254] : memref<8x8xi32, #tpu.memory_space<smem>>
    %256 = arith.index_cast %255 : i32 to index
    %c0_78 = arith.constant 0 : index
    %257 = vector.load %arg2[%256, %c0_78] : memref<10000x256xf32, #tpu.memory_space<vmem>>, vector<1x256xf32>
    %c1_i32_79 = arith.constant 1 : i32
    %258 = arith.addi %0, %c1_i32_79 : i32
    %259 = arith.index_cast %258 : i32 to index
    %260 = arith.index_cast %c5_i32_76 : i32 to index
    %261 = memref.load %arg1[%259, %260] : memref<8x8xi32, #tpu.memory_space<smem>>
    %262 = arith.index_cast %261 : i32 to index
    %c0_80 = arith.constant 0 : index
    %263 = vector.load %arg2[%262, %c0_80] : memref<10000x256xf32, #tpu.memory_space<vmem>>, vector<1x256xf32>
    %c2_i32_81 = arith.constant 2 : i32
    %264 = arith.addi %0, %c2_i32_81 : i32
    %265 = arith.index_cast %264 : i32 to index
    %266 = arith.index_cast %c5_i32_76 : i32 to index
    %267 = memref.load %arg1[%265, %266] : memref<8x8xi32, #tpu.memory_space<smem>>
    %268 = arith.index_cast %267 : i32 to index
    %c0_82 = arith.constant 0 : index
    %269 = vector.load %arg2[%268, %c0_82] : memref<10000x256xf32, #tpu.memory_space<vmem>>, vector<1x256xf32>
    %c3_i32_83 = arith.constant 3 : i32
    %270 = arith.addi %0, %c3_i32_83 : i32
    %271 = arith.index_cast %270 : i32 to index
    %272 = arith.index_cast %c5_i32_76 : i32 to index
    %273 = memref.load %arg1[%271, %272] : memref<8x8xi32, #tpu.memory_space<smem>>
    %274 = arith.index_cast %273 : i32 to index
    %c0_84 = arith.constant 0 : index
    %275 = vector.load %arg2[%274, %c0_84] : memref<10000x256xf32, #tpu.memory_space<vmem>>, vector<1x256xf32>
    %c4_i32_85 = arith.constant 4 : i32
    %276 = arith.addi %0, %c4_i32_85 : i32
    %277 = arith.index_cast %276 : i32 to index
    %278 = arith.index_cast %c5_i32_76 : i32 to index
    %279 = memref.load %arg1[%277, %278] : memref<8x8xi32, #tpu.memory_space<smem>>
    %280 = arith.index_cast %279 : i32 to index
    %c0_86 = arith.constant 0 : index
    %281 = vector.load %arg2[%280, %c0_86] : memref<10000x256xf32, #tpu.memory_space<vmem>>, vector<1x256xf32>
    %c5_i32_87 = arith.constant 5 : i32
    %282 = arith.addi %0, %c5_i32_87 : i32
    %283 = arith.index_cast %282 : i32 to index
    %284 = arith.index_cast %c5_i32_76 : i32 to index
    %285 = memref.load %arg1[%283, %284] : memref<8x8xi32, #tpu.memory_space<smem>>
    %286 = arith.index_cast %285 : i32 to index
    %c0_88 = arith.constant 0 : index
    %287 = vector.load %arg2[%286, %c0_88] : memref<10000x256xf32, #tpu.memory_space<vmem>>, vector<1x256xf32>
    %c6_i32_89 = arith.constant 6 : i32
    %288 = arith.addi %0, %c6_i32_89 : i32
    %289 = arith.index_cast %288 : i32 to index
    %290 = arith.index_cast %c5_i32_76 : i32 to index
    %291 = memref.load %arg1[%289, %290] : memref<8x8xi32, #tpu.memory_space<smem>>
    %292 = arith.index_cast %291 : i32 to index
    %c0_90 = arith.constant 0 : index
    %293 = vector.load %arg2[%292, %c0_90] : memref<10000x256xf32, #tpu.memory_space<vmem>>, vector<1x256xf32>
    %c7_i32_91 = arith.constant 7 : i32
    %294 = arith.addi %0, %c7_i32_91 : i32
    %295 = arith.index_cast %294 : i32 to index
    %296 = arith.index_cast %c5_i32_76 : i32 to index
    %297 = memref.load %arg1[%295, %296] : memref<8x8xi32, #tpu.memory_space<smem>>
    %298 = arith.index_cast %297 : i32 to index
    %c0_92 = arith.constant 0 : index
    %299 = vector.load %arg2[%298, %c0_92] : memref<10000x256xf32, #tpu.memory_space<vmem>>, vector<1x256xf32>
    %300 = tpu.concatenate %257, %263, %269, %275, %281, %287, %293, %299 in 0 : vector<1x256xf32>, vector<1x256xf32>, vector<1x256xf32>, vector<1x256xf32>, vector<1x256xf32>, vector<1x256xf32>, vector<1x256xf32>, vector<1x256xf32> -> vector<8x256xf32>
    %301 = arith.addf %251, %300 : vector<8x256xf32>
    %c6_i32_93 = arith.constant 6 : i32
    %c0_i32_94 = arith.constant 0 : i32
    %302 = arith.addi %0, %c0_i32_94 : i32
    %303 = arith.index_cast %302 : i32 to index
    %304 = arith.index_cast %c6_i32_93 : i32 to index
    %305 = memref.load %arg1[%303, %304] : memref<8x8xi32, #tpu.memory_space<smem>>
    %306 = arith.index_cast %305 : i32 to index
    %c0_95 = arith.constant 0 : index
    %307 = vector.load %arg2[%306, %c0_95] : memref<10000x256xf32, #tpu.memory_space<vmem>>, vector<1x256xf32>
    %c1_i32_96 = arith.constant 1 : i32
    %308 = arith.addi %0, %c1_i32_96 : i32
    %309 = arith.index_cast %308 : i32 to index
    %310 = arith.index_cast %c6_i32_93 : i32 to index
    %311 = memref.load %arg1[%309, %310] : memref<8x8xi32, #tpu.memory_space<smem>>
    %312 = arith.index_cast %311 : i32 to index
    %c0_97 = arith.constant 0 : index
    %313 = vector.load %arg2[%312, %c0_97] : memref<10000x256xf32, #tpu.memory_space<vmem>>, vector<1x256xf32>
    %c2_i32_98 = arith.constant 2 : i32
    %314 = arith.addi %0, %c2_i32_98 : i32
    %315 = arith.index_cast %314 : i32 to index
    %316 = arith.index_cast %c6_i32_93 : i32 to index
    %317 = memref.load %arg1[%315, %316] : memref<8x8xi32, #tpu.memory_space<smem>>
    %318 = arith.index_cast %317 : i32 to index
    %c0_99 = arith.constant 0 : index
    %319 = vector.load %arg2[%318, %c0_99] : memref<10000x256xf32, #tpu.memory_space<vmem>>, vector<1x256xf32>
    %c3_i32_100 = arith.constant 3 : i32
    %320 = arith.addi %0, %c3_i32_100 : i32
    %321 = arith.index_cast %320 : i32 to index
    %322 = arith.index_cast %c6_i32_93 : i32 to index
    %323 = memref.load %arg1[%321, %322] : memref<8x8xi32, #tpu.memory_space<smem>>
    %324 = arith.index_cast %323 : i32 to index
    %c0_101 = arith.constant 0 : index
    %325 = vector.load %arg2[%324, %c0_101] : memref<10000x256xf32, #tpu.memory_space<vmem>>, vector<1x256xf32>
    %c4_i32_102 = arith.constant 4 : i32
    %326 = arith.addi %0, %c4_i32_102 : i32
    %327 = arith.index_cast %326 : i32 to index
    %328 = arith.index_cast %c6_i32_93 : i32 to index
    %329 = memref.load %arg1[%327, %328] : memref<8x8xi32, #tpu.memory_space<smem>>
    %330 = arith.index_cast %329 : i32 to index
    %c0_103 = arith.constant 0 : index
    %331 = vector.load %arg2[%330, %c0_103] : memref<10000x256xf32, #tpu.memory_space<vmem>>, vector<1x256xf32>
    %c5_i32_104 = arith.constant 5 : i32
    %332 = arith.addi %0, %c5_i32_104 : i32
    %333 = arith.index_cast %332 : i32 to index
    %334 = arith.index_cast %c6_i32_93 : i32 to index
    %335 = memref.load %arg1[%333, %334] : memref<8x8xi32, #tpu.memory_space<smem>>
    %336 = arith.index_cast %335 : i32 to index
    %c0_105 = arith.constant 0 : index
    %337 = vector.load %arg2[%336, %c0_105] : memref<10000x256xf32, #tpu.memory_space<vmem>>, vector<1x256xf32>
    %c6_i32_106 = arith.constant 6 : i32
    %338 = arith.addi %0, %c6_i32_106 : i32
    %339 = arith.index_cast %338 : i32 to index
    %340 = arith.index_cast %c6_i32_93 : i32 to index
    %341 = memref.load %arg1[%339, %340] : memref<8x8xi32, #tpu.memory_space<smem>>
    %342 = arith.index_cast %341 : i32 to index
    %c0_107 = arith.constant 0 : index
    %343 = vector.load %arg2[%342, %c0_107] : memref<10000x256xf32, #tpu.memory_space<vmem>>, vector<1x256xf32>
    %c7_i32_108 = arith.constant 7 : i32
    %344 = arith.addi %0, %c7_i32_108 : i32
    %345 = arith.index_cast %344 : i32 to index
    %346 = arith.index_cast %c6_i32_93 : i32 to index
    %347 = memref.load %arg1[%345, %346] : memref<8x8xi32, #tpu.memory_space<smem>>
    %348 = arith.index_cast %347 : i32 to index
    %c0_109 = arith.constant 0 : index
    %349 = vector.load %arg2[%348, %c0_109] : memref<10000x256xf32, #tpu.memory_space<vmem>>, vector<1x256xf32>
    %350 = tpu.concatenate %307, %313, %319, %325, %331, %337, %343, %349 in 0 : vector<1x256xf32>, vector<1x256xf32>, vector<1x256xf32>, vector<1x256xf32>, vector<1x256xf32>, vector<1x256xf32>, vector<1x256xf32>, vector<1x256xf32> -> vector<8x256xf32>
    %351 = arith.addf %301, %350 : vector<8x256xf32>
    %c7_i32_110 = arith.constant 7 : i32
    %c0_i32_111 = arith.constant 0 : i32
    %352 = arith.addi %0, %c0_i32_111 : i32
    %353 = arith.index_cast %352 : i32 to index
    %354 = arith.index_cast %c7_i32_110 : i32 to index
    %355 = memref.load %arg1[%353, %354] : memref<8x8xi32, #tpu.memory_space<smem>>
    %356 = arith.index_cast %355 : i32 to index
    %c0_112 = arith.constant 0 : index
    %357 = vector.load %arg2[%356, %c0_112] : memref<10000x256xf32, #tpu.memory_space<vmem>>, vector<1x256xf32>
    %c1_i32_113 = arith.constant 1 : i32
    %358 = arith.addi %0, %c1_i32_113 : i32
    %359 = arith.index_cast %358 : i32 to index
    %360 = arith.index_cast %c7_i32_110 : i32 to index
    %361 = memref.load %arg1[%359, %360] : memref<8x8xi32, #tpu.memory_space<smem>>
    %362 = arith.index_cast %361 : i32 to index
    %c0_114 = arith.constant 0 : index
    %363 = vector.load %arg2[%362, %c0_114] : memref<10000x256xf32, #tpu.memory_space<vmem>>, vector<1x256xf32>
    %c2_i32_115 = arith.constant 2 : i32
    %364 = arith.addi %0, %c2_i32_115 : i32
    %365 = arith.index_cast %364 : i32 to index
    %366 = arith.index_cast %c7_i32_110 : i32 to index
    %367 = memref.load %arg1[%365, %366] : memref<8x8xi32, #tpu.memory_space<smem>>
    %368 = arith.index_cast %367 : i32 to index
    %c0_116 = arith.constant 0 : index
    %369 = vector.load %arg2[%368, %c0_116] : memref<10000x256xf32, #tpu.memory_space<vmem>>, vector<1x256xf32>
    %c3_i32_117 = arith.constant 3 : i32
    %370 = arith.addi %0, %c3_i32_117 : i32
    %371 = arith.index_cast %370 : i32 to index
    %372 = arith.index_cast %c7_i32_110 : i32 to index
    %373 = memref.load %arg1[%371, %372] : memref<8x8xi32, #tpu.memory_space<smem>>
    %374 = arith.index_cast %373 : i32 to index
    %c0_118 = arith.constant 0 : index
    %375 = vector.load %arg2[%374, %c0_118] : memref<10000x256xf32, #tpu.memory_space<vmem>>, vector<1x256xf32>
    %c4_i32_119 = arith.constant 4 : i32
    %376 = arith.addi %0, %c4_i32_119 : i32
    %377 = arith.index_cast %376 : i32 to index
    %378 = arith.index_cast %c7_i32_110 : i32 to index
    %379 = memref.load %arg1[%377, %378] : memref<8x8xi32, #tpu.memory_space<smem>>
    %380 = arith.index_cast %379 : i32 to index
    %c0_120 = arith.constant 0 : index
    %381 = vector.load %arg2[%380, %c0_120] : memref<10000x256xf32, #tpu.memory_space<vmem>>, vector<1x256xf32>
    %c5_i32_121 = arith.constant 5 : i32
    %382 = arith.addi %0, %c5_i32_121 : i32
    %383 = arith.index_cast %382 : i32 to index
    %384 = arith.index_cast %c7_i32_110 : i32 to index
    %385 = memref.load %arg1[%383, %384] : memref<8x8xi32, #tpu.memory_space<smem>>
    %386 = arith.index_cast %385 : i32 to index
    %c0_122 = arith.constant 0 : index
    %387 = vector.load %arg2[%386, %c0_122] : memref<10000x256xf32, #tpu.memory_space<vmem>>, vector<1x256xf32>
    %c6_i32_123 = arith.constant 6 : i32
    %388 = arith.addi %0, %c6_i32_123 : i32
    %389 = arith.index_cast %388 : i32 to index
    %390 = arith.index_cast %c7_i32_110 : i32 to index
    %391 = memref.load %arg1[%389, %390] : memref<8x8xi32, #tpu.memory_space<smem>>
    %392 = arith.index_cast %391 : i32 to index
    %c0_124 = arith.constant 0 : index
    %393 = vector.load %arg2[%392, %c0_124] : memref<10000x256xf32, #tpu.memory_space<vmem>>, vector<1x256xf32>
    %c7_i32_125 = arith.constant 7 : i32
    %394 = arith.addi %0, %c7_i32_125 : i32
    %395 = arith.index_cast %394 : i32 to index
    %396 = arith.index_cast %c7_i32_110 : i32 to index
    %397 = memref.load %arg1[%395, %396] : memref<8x8xi32, #tpu.memory_space<smem>>
    %398 = arith.index_cast %397 : i32 to index
    %c0_126 = arith.constant 0 : index
    %399 = vector.load %arg2[%398, %c0_126] : memref<10000x256xf32, #tpu.memory_space<vmem>>, vector<1x256xf32>
    %400 = tpu.concatenate %357, %363, %369, %375, %381, %387, %393, %399 in 0 : vector<1x256xf32>, vector<1x256xf32>, vector<1x256xf32>, vector<1x256xf32>, vector<1x256xf32>, vector<1x256xf32>, vector<1x256xf32>, vector<1x256xf32> -> vector<8x256xf32>
    %401 = arith.addf %351, %400 : vector<8x256xf32>
    %c8_i32_127 = arith.constant 8 : i32
    %cst_128 = arith.constant 1.250000e-01 : f32
    %402 = vector.broadcast %cst_128 : f32 to vector<8x256xf32>
    %403 = arith.mulf %401, %402 : vector<8x256xf32>
    %c0_129 = arith.constant 0 : index
    %c0_130 = arith.constant 0 : index
    %404 = vector.load %arg3[%c0_129, %c0_130] : memref<256x1xf32, #tpu.memory_space<vmem>>, vector<256x1xf32>
    %cst_131 = arith.constant dense<0.000000e+00> : vector<8x1xf32>
    %405 = tpu.matmul %403, %404, %cst_131 {dimension_numbers = #tpu.dot_dimension_numbers<[1], [0], [0], [1], [0, 0, 1, 1], [], []>} : vector<8x256xf32>, vector<256x1xf32>, vector<8x1xf32> -> vector<8x1xf32>
    %c0_132 = arith.constant 0 : index
    %c0_133 = arith.constant 0 : index
    %406 = memref.load %arg4[%c0_132, %c0_133] : memref<1x1xf32, #tpu.memory_space<smem>>
    %407 = vector.broadcast %406 : f32 to vector<8x1xf32>
    %408 = arith.addf %405, %407 : vector<8x1xf32>
    %c0_134 = arith.constant 0 : index
    %c0_135 = arith.constant 0 : index
    %409 = vector.load %arg5[%c0_134, %c0_135] : memref<8x1xf32, #tpu.memory_space<vmem>>, vector<8x1xf32>
    tpu.vector_store %arg5[%c0_134, %c0_135], %408 {strides = array<i32>} : memref<8x1xf32, #tpu.memory_space<vmem>>, vector<8x1xf32>,
    return
  }
  func.func @transform_0(%arg0: i32, %arg1: memref<8x8xi32, #tpu.memory_space<smem>>) -> (i32, i32) {
    %c0_i32 = arith.constant 0 : i32
    %c0_i32_0 = arith.constant 0 : i32
    %c0_i32_1 = arith.constant 0 : i32
    return %c0_i32, %c0_i32_0 : i32, i32
  }
  func.func @transform_1(%arg0: i32, %arg1: memref<8x8xi32, #tpu.memory_space<smem>>) -> (i32, i32) {
    %c0_i32 = arith.constant 0 : i32
    %c0_i32_0 = arith.constant 0 : i32
    %c0_i32_1 = arith.constant 0 : i32
    return %c0_i32, %c0_i32_0 : i32, i32
  }
  func.func @transform_2(%arg0: i32, %arg1: memref<8x8xi32, #tpu.memory_space<smem>>) -> (i32, i32) {
    %c0_i32 = arith.constant 0 : i32
    %c0_i32_0 = arith.constant 0 : i32
    %c0_i32_1 = arith.constant 0 : i32
    return %c0_i32, %c0_i32_0 : i32, i32
  }
  func.func @transform_3(%arg0: i32, %arg1: memref<8x8xi32, #tpu.memory_space<smem>>) -> (i32, i32) {
    %c0_i32 = arith.constant 0 : i32
    %c0_i32_0 = arith.constant 0 : i32
    return %arg0, %c0_i32 : i32, i32
  }
}

</mosaic_0001>

<llo_original>
// kernel: tpu_custom_call.1
$region0: #{tpu_custom_call.1}
  #allocation0 [shape = 'u32[]', space=smem, size = 0x4, offset = 0x4, fixed_abs, tag = 'smem constant byte address 0x4 - core index']
  #allocation1 [shape = 'u32[72,128]{1,0:T(1,128)}', space=vmem, size = 0x9000, scoped, tag = 'internal scratch']
  #allocation2 [shape = 's32[1]{0}', space=sflag, size = 0x4, scoped, tag = 'scoped memory for tpu_custom_call.1']
  #allocation3 [shape = 'u8[4096]{0}', space=smem, size = 0x1000, scoped, tag = 'prefetched SMEM operand 0']
  #allocation4 [shape = 'f32[1,1]{1,0:T(1,128)S(6)}', space=smem, size = 0x200, scoped, tag = 'scoped memory for tpu_custom_call.1']
  %s0 = inlined_call_operand.hbm [shape: s32[8,8], index: 0, kind: input, shape index: {}]
  %s1 = inlined_call_operand.hbm [shape: f32[10000,256], index: 1, kind: input, shape index: {}]
  %s2 = inlined_call_operand.vmem [shape: f32[256,1], index: 2, kind: input, shape index: {}]
  %s3 = inlined_call_operand.<no memory space> [shape: f32[1,1], index: 3, kind: input, shape index: {}]
  %s4 = inlined_call_operand.vmem [shape: f32[8,1], index: 4, kind: output, shape index: {}]
  %s5 = sld [smem:[#allocation0]]
  $region26: #{tpu_custom_call.1} parent=0
    _
  %s7 = ssub.s32 1, %s5
  %s8 = scalar_select 0, %s7, %s5
  %s10 = sshll.u32 %s0, 4
  %s11 = int_to_ptr.hbm [resolvable:$true] %s10
  %13 = dma.hbm_to_smem %s11, 128, [#allocation3], [#allocation2]
  %14 = sst [smem:[#allocation4]] %s3
  %16 = dma.done [#allocation2], 128
  %17 = sfence
  $region1: #{tpu_custom_call.1} parent=0
    #allocation5 [shape = 'u8[10240000]{0}', space=vmem, size = 0x9c4000, scoped, tag = 'input window, operand 1, single buffered']
    #allocation6 [shape = 's32[1]{0}', space=sflag, size = 0x4, scoped, tag = 'scoped memory for tpu_custom_call.1']
    %18 = vsyncpa [#allocation6], 0
    // Predicated region
    $region2: #{tpu_custom_call.1} parent=1 // pred_check
      _
    $region3: #{tpu_custom_call.1} parent=1 // pred_check_branch
      %20 = sbr.rel (0) target = $region5
    $region4: #{tpu_custom_call.1} parent=1 // pred_region
      %22 = vsyncadd [#allocation6], 0
      %s23 = sshll.u32 %s1, 4
      %s24 = int_to_ptr.hbm [resolvable:$true] %s23
      %s25 = sshll.u32 [#allocation5], 4
      %s26 = int_to_ptr.vmem [resolvable:$true] %s25
      %31 = dma.hbm_to_vmem [thread:$0]  %s24, 320000, %s26, [#allocation6], 256, 256, 16
    $region5: #{tpu_custom_call.1} parent=1 // pred_fallthru
      _
    // Predicated region
    $region6: #{tpu_custom_call.1} parent=1 // pred_check
      _
    $region7: #{tpu_custom_call.1} parent=1 // pred_check_branch
      %33 = sbr.rel (0) target = $region9
    $region8: #{tpu_custom_call.1} parent=1 // pred_region
      _
    $region9: #{tpu_custom_call.1} parent=1 // pred_fallthru
      _
    // Predicated region
    $region10: #{tpu_custom_call.1} parent=1 // pred_check
      _
    $region11: #{tpu_custom_call.1} parent=1 // pred_check_branch
      %35 = sbr.rel (0) target = $region13
    $region12: #{tpu_custom_call.1} parent=1 // pred_region
      _
    $region13: #{tpu_custom_call.1} parent=1 // pred_fallthru
      _
    // Predicated region
    $region14: #{tpu_custom_call.1} parent=1 // pred_check
      _
    $region15: #{tpu_custom_call.1} parent=1 // pred_check_branch
      %37 = sbr.rel (0) target = $region17
    $region16: #{tpu_custom_call.1} parent=1 // pred_region
      %39 = dma.done [#allocation6], 320000
    $region17: #{tpu_custom_call.1} parent=1 // pred_fallthru
      _
    %s40 = smul.u32 0, 8
    %s41 = smul.u32 %s40, 128
    %s42 = sld [smem:[#allocation3 + %s41]]
    %s43 = sshra.s32 %s42, 3
    %s44 = sand.u32 %s42, 7
    %s45 = sshra.s32 %s42, 3
    %s46 = sand.u32 %s42, 7
    %s47 = smul.u32 %s43, 2
    %s48 = smul.u32 %s47, 8
    %s49 = sadd.s32 %s48, %s46
    %s50 = scalar_lea.vmem [#allocation5], %s49
    %v51 = vld [vmem:[%s50] ss:$8 sm:$0x3]
    %s52 = sadd.s32 %s40, 1
    %s53 = smul.u32 %s52, 128
    %s54 = sld [smem:[#allocation3 + %s53]]
    %s55 = sshra.s32 %s54, 3
    %s56 = sand.u32 %s54, 7
    %s57 = sshra.s32 %s54, 3
    %s58 = sand.u32 %s54, 7
    %s59 = smul.u32 %s55, 2
    %s60 = smul.u32 %s59, 8
    %s61 = sadd.s32 %s60, %s58
    %s62 = scalar_lea.vmem [#allocation5], %s61
    %v63 = vld [vmem:[%s62] ss:$8 sm:$0x3]
    %s64 = sadd.s32 %s40, 2
    %s65 = smul.u32 %s64, 128
    %s66 = sld [smem:[#allocation3 + %s65]]
    %s67 = sshra.s32 %s66, 3
    %s68 = sand.u32 %s66, 7
    %s69 = sshra.s32 %s66, 3
    %s70 = sand.u32 %s66, 7
    %s71 = smul.u32 %s67, 2
    %s72 = smul.u32 %s71, 8
    %s73 = sadd.s32 %s72, %s70
    %s74 = scalar_lea.vmem [#allocation5], %s73
    %v75 = vld [vmem:[%s74] ss:$8 sm:$0x3]
    %s76 = sadd.s32 %s40, 3
    %s77 = smul.u32 %s76, 128
    %s78 = sld [smem:[#allocation3 + %s77]]
    %s79 = sshra.s32 %s78, 3
    %s80 = sand.u32 %s78, 7
    %s81 = sshra.s32 %s78, 3
    %s82 = sand.u32 %s78, 7
    %s83 = smul.u32 %s79, 2
    %s84 = smul.u32 %s83, 8
    %s85 = sadd.s32 %s84, %s82
    %s86 = scalar_lea.vmem [#allocation5], %s85
    %v87 = vld [vmem:[%s86] ss:$8 sm:$0x3]
    %s88 = sadd.s32 %s40, 4
    %s89 = smul.u32 %s88, 128
    %s90 = sld [smem:[#allocation3 + %s89]]
    %s91 = sshra.s32 %s90, 3
    %s92 = sand.u32 %s90, 7
    %s93 = sshra.s32 %s90, 3
    %s94 = sand.u32 %s90, 7
    %s95 = smul.u32 %s91, 2
    %s96 = smul.u32 %s95, 8
    %s97 = sadd.s32 %s96, %s94
    %s98 = scalar_lea.vmem [#allocation5], %s97
    %v99 = vld [vmem:[%s98] ss:$8 sm:$0x3]
    %s100 = sadd.s32 %s40, 5
    %s101 = smul.u32 %s100, 128
    %s102 = sld [smem:[#allocation3 + %s101]]
    %s103 = sshra.s32 %s102, 3
    %s104 = sand.u32 %s102, 7
    %s105 = sshra.s32 %s102, 3
    %s106 = sand.u32 %s102, 7
    %s107 = smul.u32 %s103, 2
    %s108 = smul.u32 %s107, 8
    %s109 = sadd.s32 %s108, %s106
    %s110 = scalar_lea.vmem [#allocation5], %s109
    %v111 = vld [vmem:[%s110] ss:$8 sm:$0x3]
    %s112 = sadd.s32 %s40, 6
    %s113 = smul.u32 %s112, 128
    %s114 = sld [smem:[#allocation3 + %s113]]
    %s115 = sshra.s32 %s114, 3
    %s116 = sand.u32 %s114, 7
    %s117 = sshra.s32 %s114, 3
    %s118 = sand.u32 %s114, 7
    %s119 = smul.u32 %s115, 2
    %s120 = smul.u32 %s119, 8
    %s121 = sadd.s32 %s120, %s118
    %s122 = scalar_lea.vmem [#allocation5], %s121
    %v123 = vld [vmem:[%s122] ss:$8 sm:$0x3]
    %s124 = sadd.s32 %s40, 7
    %s125 = smul.u32 %s124, 128
    %s126 = sld [smem:[#allocation3 + %s125]]
    %s127 = sshra.s32 %s126, 3
    %s128 = sand.u32 %s126, 7
    %s129 = sshra.s32 %s126, 3
    %s130 = sand.u32 %s126, 7
    %s131 = smul.u32 %s127, 2
    %s132 = smul.u32 %s131, 8
    %s133 = sadd.s32 %s132, %s130
    %s134 = scalar_lea.vmem [#allocation5], %s133
    %v135 = vld [vmem:[%s134] ss:$8 sm:$0x3]
    %v137 = vperm.slane %v51, 0
    %v138 = vperm.slane %v51, 1
    %v142 = vperm.slane %v63, 0
    %v143 = vperm.slane %v63, 1
    %v147 = vperm.slane %v75, 0
    %v148 = vperm.slane %v75, 1
    %v152 = vperm.slane %v87, 0
    %v153 = vperm.slane %v87, 1
    %v157 = vperm.slane %v99, 0
    %v158 = vperm.slane %v99, 1
    %v162 = vperm.slane %v111, 0
    %v163 = vperm.slane %v111, 1
    %v167 = vperm.slane %v123, 0
    %v168 = vperm.slane %v123, 1
    %v172 = vperm.slane %v135, 0
    %v173 = vperm.slane %v135, 1
    %vm176 = vcmask 1040384
    %v177 = vsel %vm176, %v137, %v142
    %v178 = vsel %vm176, %v138, %v143
    %vm179 = vcmask 1041408
    %v180 = vsel %vm179, %v177, %v147
    %v181 = vsel %vm179, %v178, %v148
    %vm182 = vcmask 1042432
    %v183 = vsel %vm182, %v180, %v152
    %v184 = vsel %vm182, %v181, %v153
    %vm185 = vcmask 1043456
    %v186 = vsel %vm185, %v183, %v157
    %v187 = vsel %vm185, %v184, %v158
    %vm188 = vcmask 1044480
    %v189 = vsel %vm188, %v186, %v162
    %v190 = vsel %vm188, %v187, %v163
    %vm191 = vcmask 1045504
    %v192 = vsel %vm191, %v189, %v167
    %v193 = vsel %vm191, %v190, %v168
    %vm194 = vcmask 1046528
    %v195 = vsel %vm194, %v192, %v172
    %v196 = vsel %vm194, %v193, %v173
    %v197 = vadd.f32 %v195, 0.0
    %v198 = vadd.f32 %v196, 0.0
    %s199 = sadd.s32 %s41, 1
    %s200 = sld [smem:[#allocation3 + %s199]]
    %s201 = sshra.s32 %s200, 3
    %s202 = sand.u32 %s200, 7
    %s203 = sshra.s32 %s200, 3
    %s204 = sand.u32 %s200, 7
    %s205 = smul.u32 %s201, 2
    %s206 = smul.u32 %s205, 8
    %s207 = sadd.s32 %s206, %s204
    %s208 = scalar_lea.vmem [#allocation5], %s207
    %v209 = vld [vmem:[%s208] ss:$8 sm:$0x3]
    %s210 = sadd.s32 %s53, 1
    %s211 = sld [smem:[#allocation3 + %s210]]
    %s212 = sshra.s32 %s211, 3
    %s213 = sand.u32 %s211, 7
    %s214 = sshra.s32 %s211, 3
    %s215 = sand.u32 %s211, 7
    %s216 = smul.u32 %s212, 2
    %s217 = smul.u32 %s216, 8
    %s218 = sadd.s32 %s217, %s215
    %s219 = scalar_lea.vmem [#allocation5], %s218
    %v220 = vld [vmem:[%s219] ss:$8 sm:$0x3]
    %s221 = sadd.s32 %s65, 1
    %s222 = sld [smem:[#allocation3 + %s221]]
    %s223 = sshra.s32 %s222, 3
    %s224 = sand.u32 %s222, 7
    %s225 = sshra.s32 %s222, 3
    %s226 = sand.u32 %s222, 7
    %s227 = smul.u32 %s223, 2
    %s228 = smul.u32 %s227, 8
    %s229 = sadd.s32 %s228, %s226
    %s230 = scalar_lea.vmem [#allocation5], %s229
    %v231 = vld [vmem:[%s230] ss:$8 sm:$0x3]
    %s232 = sadd.s32 %s77, 1
    %s233 = sld [smem:[#allocation3 + %s232]]
    %s234 = sshra.s32 %s233, 3
    %s235 = sand.u32 %s233, 7
    %s236 = sshra.s32 %s233, 3
    %s237 = sand.u32 %s233, 7
    %s238 = smul.u32 %s234, 2
    %s239 = smul.u32 %s238, 8
    %s240 = sadd.s32 %s239, %s237
    %s241 = scalar_lea.vmem [#allocation5], %s240
    %v242 = vld [vmem:[%s241] ss:$8 sm:$0x3]
    %s243 = sadd.s32 %s89, 1
    %s244 = sld [smem:[#allocation3 + %s243]]
    %s245 = sshra.s32 %s244, 3
    %s246 = sand.u32 %s244, 7
    %s247 = sshra.s32 %s244, 3
    %s248 = sand.u32 %s244, 7
    %s249 = smul.u32 %s245, 2
    %s250 = smul.u32 %s249, 8
    %s251 = sadd.s32 %s250, %s248
    %s252 = scalar_lea.vmem [#allocation5], %s251
    %v253 = vld [vmem:[%s252] ss:$8 sm:$0x3]
    %s254 = sadd.s32 %s101, 1
    %s255 = sld [smem:[#allocation3 + %s254]]
    %s256 = sshra.s32 %s255, 3
    %s257 = sand.u32 %s255, 7
    %s258 = sshra.s32 %s255, 3
    %s259 = sand.u32 %s255, 7
    %s260 = smul.u32 %s256, 2
    %s261 = smul.u32 %s260, 8
    %s262 = sadd.s32 %s261, %s259
    %s263 = scalar_lea.vmem [#allocation5], %s262
    %v264 = vld [vmem:[%s263] ss:$8 sm:$0x3]
    %s265 = sadd.s32 %s113, 1
    %s266 = sld [smem:[#allocation3 + %s265]]
    %s267 = sshra.s32 %s266, 3
    %s268 = sand.u32 %s266, 7
    %s269 = sshra.s32 %s266, 3
    %s270 = sand.u32 %s266, 7
    %s271 = smul.u32 %s267, 2
    %s272 = smul.u32 %s271, 8
    %s273 = sadd.s32 %s272, %s270
    %s274 = scalar_lea.vmem [#allocation5], %s273
    %v275 = vld [vmem:[%s274] ss:$8 sm:$0x3]
    %s276 = sadd.s32 %s125, 1
    %s277 = sld [smem:[#allocation3 + %s276]]
    %s278 = sshra.s32 %s277, 3
    %s279 = sand.u32 %s277, 7
    %s280 = sshra.s32 %s277, 3
    %s281 = sand.u32 %s277, 7
    %s282 = smul.u32 %s278, 2
    %s283 = smul.u32 %s282, 8
    %s284 = sadd.s32 %s283, %s281
    %s285 = scalar_lea.vmem [#allocation5], %s284
    %v286 = vld [vmem:[%s285] ss:$8 sm:$0x3]
    %v288 = vperm.slane %v209, 0
    %v289 = vperm.slane %v209, 1
    %v293 = vperm.slane %v220, 0
    %v294 = vperm.slane %v220, 1
    %v298 = vperm.slane %v231, 0
    %v299 = vperm.slane %v231, 1
    %v303 = vperm.slane %v242, 0
    %v304 = vperm.slane %v242, 1
    %v308 = vperm.slane %v253, 0
    %v309 = vperm.slane %v253, 1
    %v313 = vperm.slane %v264, 0
    %v314 = vperm.slane %v264, 1
    %v318 = vperm.slane %v275, 0
    %v319 = vperm.slane %v275, 1
    %v323 = vperm.slane %v286, 0
    %v324 = vperm.slane %v286, 1
    %v327 = vsel %vm176, %v288, %v293
    %v328 = vsel %vm176, %v289, %v294
    %v329 = vsel %vm179, %v327, %v298
    %v330 = vsel %vm179, %v328, %v299
    %v331 = vsel %vm182, %v329, %v303
    %v332 = vsel %vm182, %v330, %v304
    %v333 = vsel %vm185, %v331, %v308
    %v334 = vsel %vm185, %v332, %v309
    %v335 = vsel %vm188, %v333, %v313
    %v336 = vsel %vm188, %v334, %v314
    %v337 = vsel %vm191, %v335, %v318
    %v338 = vsel %vm191, %v336, %v319
    %v339 = vsel %vm194, %v337, %v323
    %v340 = vsel %vm194, %v338, %v324
    %v341 = vadd.f32 %v197, %v339
    %v342 = vadd.f32 %v198, %v340
    %s343 = sadd.s32 %s41, 2
    %s344 = sld [smem:[#allocation3 + %s343]]
    %s345 = sshra.s32 %s344, 3
    %s346 = sand.u32 %s344, 7
    %s347 = sshra.s32 %s344, 3
    %s348 = sand.u32 %s344, 7
    %s349 = smul.u32 %s345, 2
    %s350 = smul.u32 %s349, 8
    %s351 = sadd.s32 %s350, %s348
    %s352 = scalar_lea.vmem [#allocation5], %s351
    %v353 = vld [vmem:[%s352] ss:$8 sm:$0x3]
    %s354 = sadd.s32 %s53, 2
    %s355 = sld [smem:[#allocation3 + %s354]]
    %s356 = sshra.s32 %s355, 3
    %s357 = sand.u32 %s355, 7
    %s358 = sshra.s32 %s355, 3
    %s359 = sand.u32 %s355, 7
    %s360 = smul.u32 %s356, 2
    %s361 = smul.u32 %s360, 8
    %s362 = sadd.s32 %s361, %s359
    %s363 = scalar_lea.vmem [#allocation5], %s362
    %v364 = vld [vmem:[%s363] ss:$8 sm:$0x3]
    %s365 = sadd.s32 %s65, 2
    %s366 = sld [smem:[#allocation3 + %s365]]
    %s367 = sshra.s32 %s366, 3
    %s368 = sand.u32 %s366, 7
    %s369 = sshra.s32 %s366, 3
    %s370 = sand.u32 %s366, 7
    %s371 = smul.u32 %s367, 2
    %s372 = smul.u32 %s371, 8
    %s373 = sadd.s32 %s372, %s370
    %s374 = scalar_lea.vmem [#allocation5], %s373
    %v375 = vld [vmem:[%s374] ss:$8 sm:$0x3]
    %s376 = sadd.s32 %s77, 2
    %s377 = sld [smem:[#allocation3 + %s376]]
    %s378 = sshra.s32 %s377, 3
    %s379 = sand.u32 %s377, 7
    %s380 = sshra.s32 %s377, 3
    %s381 = sand.u32 %s377, 7
    %s382 = smul.u32 %s378, 2
    %s383 = smul.u32 %s382, 8
    %s384 = sadd.s32 %s383, %s381
    %s385 = scalar_lea.vmem [#allocation5], %s384
    %v386 = vld [vmem:[%s385] ss:$8 sm:$0x3]
    %s387 = sadd.s32 %s89, 2
    %s388 = sld [smem:[#allocation3 + %s387]]
    %s389 = sshra.s32 %s388, 3
    %s390 = sand.u32 %s388, 7
    %s391 = sshra.s32 %s388, 3
    %s392 = sand.u32 %s388, 7
    %s393 = smul.u32 %s389, 2
    %s394 = smul.u32 %s393, 8
    %s395 = sadd.s32 %s394, %s392
    %s396 = scalar_lea.vmem [#allocation5], %s395
    %v397 = vld [vmem:[%s396] ss:$8 sm:$0x3]
    %s398 = sadd.s32 %s101, 2
    %s399 = sld [smem:[#allocation3 + %s398]]
    %s400 = sshra.s32 %s399, 3
    %s401 = sand.u32 %s399, 7
    %s402 = sshra.s32 %s399, 3
    %s403 = sand.u32 %s399, 7
    %s404 = smul.u32 %s400, 2
    %s405 = smul.u32 %s404, 8
    %s406 = sadd.s32 %s405, %s403
    %s407 = scalar_lea.vmem [#allocation5], %s406
    %v408 = vld [vmem:[%s407] ss:$8 sm:$0x3]
    %s409 = sadd.s32 %s113, 2
    %s410 = sld [smem:[#allocation3 + %s409]]
    %s411 = sshra.s32 %s410, 3
    %s412 = sand.u32 %s410, 7
    %s413 = sshra.s32 %s410, 3
    %s414 = sand.u32 %s410, 7
    %s415 = smul.u32 %s411, 2
    %s416 = smul.u32 %s415, 8
    %s417 = sadd.s32 %s416, %s414
    %s418 = scalar_lea.vmem [#allocation5], %s417
    %v419 = vld [vmem:[%s418] ss:$8 sm:$0x3]
    %s420 = sadd.s32 %s125, 2
    %s421 = sld [smem:[#allocation3 + %s420]]
    %s422 = sshra.s32 %s421, 3
    %s423 = sand.u32 %s421, 7
    %s424 = sshra.s32 %s421, 3
    %s425 = sand.u32 %s421, 7
    %s426 = smul.u32 %s422, 2
    %s427 = smul.u32 %s426, 8
    %s428 = sadd.s32 %s427, %s425
    %s429 = scalar_lea.vmem [#allocation5], %s428
    %v430 = vld [vmem:[%s429] ss:$8 sm:$0x3]
    %v432 = vperm.slane %v353, 0
    %v433 = vperm.slane %v353, 1
    %v437 = vperm.slane %v364, 0
    %v438 = vperm.slane %v364, 1
    %v442 = vperm.slane %v375, 0
    %v443 = vperm.slane %v375, 1
    %v447 = vperm.slane %v386, 0
    %v448 = vperm.slane %v386, 1
    %v452 = vperm.slane %v397, 0
    %v453 = vperm.slane %v397, 1
    %v457 = vperm.slane %v408, 0
    %v458 = vperm.slane %v408, 1
    %v462 = vperm.slane %v419, 0
    %v463 = vperm.slane %v419, 1
    %v467 = vperm.slane %v430, 0
    %v468 = vperm.slane %v430, 1
    %v471 = vsel %vm176, %v432, %v437
    %v472 = vsel %vm176, %v433, %v438
    %v473 = vsel %vm179, %v471, %v442
    %v474 = vsel %vm179, %v472, %v443
    %v475 = vsel %vm182, %v473, %v447
    %v476 = vsel %vm182, %v474, %v448
    %v477 = vsel %vm185, %v475, %v452
    %v478 = vsel %vm185, %v476, %v453
    %v479 = vsel %vm188, %v477, %v457
    %v480 = vsel %vm188, %v478, %v458
    %v481 = vsel %vm191, %v479, %v462
    %v482 = vsel %vm191, %v480, %v463
    %v483 = vsel %vm194, %v481, %v467
    %v484 = vsel %vm194, %v482, %v468
    %v485 = vadd.f32 %v341, %v483
    %v486 = vadd.f32 %v342, %v484
    %s487 = sadd.s32 %s41, 3
    %s488 = sld [smem:[#allocation3 + %s487]]
    %s489 = sshra.s32 %s488, 3
    %s490 = sand.u32 %s488, 7
    %s491 = sshra.s32 %s488, 3
    %s492 = sand.u32 %s488, 7
    %s493 = smul.u32 %s489, 2
    %s494 = smul.u32 %s493, 8
    %s495 = sadd.s32 %s494, %s492
    %s496 = scalar_lea.vmem [#allocation5], %s495
    %v497 = vld [vmem:[%s496] ss:$8 sm:$0x3]
    %s498 = sadd.s32 %s53, 3
    %s499 = sld [smem:[#allocation3 + %s498]]
    %s500 = sshra.s32 %s499, 3
    %s501 = sand.u32 %s499, 7
    %s502 = sshra.s32 %s499, 3
    %s503 = sand.u32 %s499, 7
    %s504 = smul.u32 %s500, 2
    %s505 = smul.u32 %s504, 8
    %s506 = sadd.s32 %s505, %s503
    %s507 = scalar_lea.vmem [#allocation5], %s506
    %v508 = vld [vmem:[%s507] ss:$8 sm:$0x3]
    %s509 = sadd.s32 %s65, 3
    %s510 = sld [smem:[#allocation3 + %s509]]
    %s511 = sshra.s32 %s510, 3
    %s512 = sand.u32 %s510, 7
    %s513 = sshra.s32 %s510, 3
    %s514 = sand.u32 %s510, 7
    %s515 = smul.u32 %s511, 2
    %s516 = smul.u32 %s515, 8
    %s517 = sadd.s32 %s516, %s514
    %s518 = scalar_lea.vmem [#allocation5], %s517
    %v519 = vld [vmem:[%s518] ss:$8 sm:$0x3]
    %s520 = sadd.s32 %s77, 3
    %s521 = sld [smem:[#allocation3 + %s520]]
    %s522 = sshra.s32 %s521, 3
    %s523 = sand.u32 %s521, 7
    %s524 = sshra.s32 %s521, 3
    %s525 = sand.u32 %s521, 7
    %s526 = smul.u32 %s522, 2
    %s527 = smul.u32 %s526, 8
    %s528 = sadd.s32 %s527, %s525
    %s529 = scalar_lea.vmem [#allocation5], %s528
    %v530 = vld [vmem:[%s529] ss:$8 sm:$0x3]
    %s531 = sadd.s32 %s89, 3
    %s532 = sld [smem:[#allocation3 + %s531]]
    %s533 = sshra.s32 %s532, 3
    %s534 = sand.u32 %s532, 7
    %s535 = sshra.s32 %s532, 3
    %s536 = sand.u32 %s532, 7
    %s537 = smul.u32 %s533, 2
    %s538 = smul.u32 %s537, 8
    %s539 = sadd.s32 %s538, %s536
    %s540 = scalar_lea.vmem [#allocation5], %s539
    %v541 = vld [vmem:[%s540] ss:$8 sm:$0x3]
    %s542 = sadd.s32 %s101, 3
    %s543 = sld [smem:[#allocation3 + %s542]]
    %s544 = sshra.s32 %s543, 3
    %s545 = sand.u32 %s543, 7
    %s546 = sshra.s32 %s543, 3
    %s547 = sand.u32 %s543, 7
    %s548 = smul.u32 %s544, 2
    %s549 = smul.u32 %s548, 8
    %s550 = sadd.s32 %s549, %s547
    %s551 = scalar_lea.vmem [#allocation5], %s550
    %v552 = vld [vmem:[%s551] ss:$8 sm:$0x3]
    %s553 = sadd.s32 %s113, 3
    %s554 = sld [smem:[#allocation3 + %s553]]
    %s555 = sshra.s32 %s554, 3
    %s556 = sand.u32 %s554, 7
    %s557 = sshra.s32 %s554, 3
    %s558 = sand.u32 %s554, 7
    %s559 = smul.u32 %s555, 2
    %s560 = smul.u32 %s559, 8
    %s561 = sadd.s32 %s560, %s558
    %s562 = scalar_lea.vmem [#allocation5], %s561
    %v563 = vld [vmem:[%s562] ss:$8 sm:$0x3]
    %s564 = sadd.s32 %s125, 3
    %s565 = sld [smem:[#allocation3 + %s564]]
    %s566 = sshra.s32 %s565, 3
    %s567 = sand.u32 %s565, 7
    %s568 = sshra.s32 %s565, 3
    %s569 = sand.u32 %s565, 7
    %s570 = smul.u32 %s566, 2
    %s571 = smul.u32 %s570, 8
    %s572 = sadd.s32 %s571, %s569
    %s573 = scalar_lea.vmem [#allocation5], %s572
    %v574 = vld [vmem:[%s573] ss:$8 sm:$0x3]
    %v576 = vperm.slane %v497, 0
    %v577 = vperm.slane %v497, 1
    %v581 = vperm.slane %v508, 0
    %v582 = vperm.slane %v508, 1
    %v586 = vperm.slane %v519, 0
    %v587 = vperm.slane %v519, 1
    %v591 = vperm.slane %v530, 0
    %v592 = vperm.slane %v530, 1
    %v596 = vperm.slane %v541, 0
    %v597 = vperm.slane %v541, 1
    %v601 = vperm.slane %v552, 0
    %v602 = vperm.slane %v552, 1
    %v606 = vperm.slane %v563, 0
    %v607 = vperm.slane %v563, 1
    %v611 = vperm.slane %v574, 0
    %v612 = vperm.slane %v574, 1
    %v615 = vsel %vm176, %v576, %v581
    %v616 = vsel %vm176, %v577, %v582
    %v617 = vsel %vm179, %v615, %v586
    %v618 = vsel %vm179, %v616, %v587
    %v619 = vsel %vm182, %v617, %v591
    %v620 = vsel %vm182, %v618, %v592
    %v621 = vsel %vm185, %v619, %v596
    %v622 = vsel %vm185, %v620, %v597
    %v623 = vsel %vm188, %v621, %v601
    %v624 = vsel %vm188, %v622, %v602
    %v625 = vsel %vm191, %v623, %v606
    %v626 = vsel %vm191, %v624, %v607
    %v627 = vsel %vm194, %v625, %v611
    %v628 = vsel %vm194, %v626, %v612
    %v629 = vadd.f32 %v485, %v627
    %v630 = vadd.f32 %v486, %v628
    %s631 = sadd.s32 %s41, 4
    %s632 = sld [smem:[#allocation3 + %s631]]
    %s633 = sshra.s32 %s632, 3
    %s634 = sand.u32 %s632, 7
    %s635 = sshra.s32 %s632, 3
    %s636 = sand.u32 %s632, 7
    %s637 = smul.u32 %s633, 2
    %s638 = smul.u32 %s637, 8
    %s639 = sadd.s32 %s638, %s636
    %s640 = scalar_lea.vmem [#allocation5], %s639
    %v641 = vld [vmem:[%s640] ss:$8 sm:$0x3]
    %s642 = sadd.s32 %s53, 4
    %s643 = sld [smem:[#allocation3 + %s642]]
    %s644 = sshra.s32 %s643, 3
    %s645 = sand.u32 %s643, 7
    %s646 = sshra.s32 %s643, 3
    %s647 = sand.u32 %s643, 7
    %s648 = smul.u32 %s644, 2
    %s649 = smul.u32 %s648, 8
    %s650 = sadd.s32 %s649, %s647
    %s651 = scalar_lea.vmem [#allocation5], %s650
    %v652 = vld [vmem:[%s651] ss:$8 sm:$0x3]
    %s653 = sadd.s32 %s65, 4
    %s654 = sld [smem:[#allocation3 + %s653]]
    %s655 = sshra.s32 %s654, 3
    %s656 = sand.u32 %s654, 7
    %s657 = sshra.s32 %s654, 3
    %s658 = sand.u32 %s654, 7
    %s659 = smul.u32 %s655, 2
    %s660 = smul.u32 %s659, 8
    %s661 = sadd.s32 %s660, %s658
    %s662 = scalar_lea.vmem [#allocation5], %s661
    %v663 = vld [vmem:[%s662] ss:$8 sm:$0x3]
    %s664 = sadd.s32 %s77, 4
    %s665 = sld [smem:[#allocation3 + %s664]]
    %s666 = sshra.s32 %s665, 3
    %s667 = sand.u32 %s665, 7
    %s668 = sshra.s32 %s665, 3
    %s669 = sand.u32 %s665, 7
    %s670 = smul.u32 %s666, 2
    %s671 = smul.u32 %s670, 8
    %s672 = sadd.s32 %s671, %s669
    %s673 = scalar_lea.vmem [#allocation5], %s672
    %v674 = vld [vmem:[%s673] ss:$8 sm:$0x3]
    %s675 = sadd.s32 %s89, 4
    %s676 = sld [smem:[#allocation3 + %s675]]
    %s677 = sshra.s32 %s676, 3
    %s678 = sand.u32 %s676, 7
    %s679 = sshra.s32 %s676, 3
    %s680 = sand.u32 %s676, 7
    %s681 = smul.u32 %s677, 2
    %s682 = smul.u32 %s681, 8
    %s683 = sadd.s32 %s682, %s680
    %s684 = scalar_lea.vmem [#allocation5], %s683
    %v685 = vld [vmem:[%s684] ss:$8 sm:$0x3]
    %s686 = sadd.s32 %s101, 4
    %s687 = sld [smem:[#allocation3 + %s686]]
    %s688 = sshra.s32 %s687, 3
    %s689 = sand.u32 %s687, 7
    %s690 = sshra.s32 %s687, 3
    %s691 = sand.u32 %s687, 7
    %s692 = smul.u32 %s688, 2
    %s693 = smul.u32 %s692, 8
    %s694 = sadd.s32 %s693, %s691
    %s695 = scalar_lea.vmem [#allocation5], %s694
    %v696 = vld [vmem:[%s695] ss:$8 sm:$0x3]
    %s697 = sadd.s32 %s113, 4
    %s698 = sld [smem:[#allocation3 + %s697]]
    %s699 = sshra.s32 %s698, 3
    %s700 = sand.u32 %s698, 7
    %s701 = sshra.s32 %s698, 3
    %s702 = sand.u32 %s698, 7
    %s703 = smul.u32 %s699, 2
    %s704 = smul.u32 %s703, 8
    %s705 = sadd.s32 %s704, %s702
    %s706 = scalar_lea.vmem [#allocation5], %s705
    %v707 = vld [vmem:[%s706] ss:$8 sm:$0x3]
    %s708 = sadd.s32 %s125, 4
    %s709 = sld [smem:[#allocation3 + %s708]]
    %s710 = sshra.s32 %s709, 3
    %s711 = sand.u32 %s709, 7
    %s712 = sshra.s32 %s709, 3
    %s713 = sand.u32 %s709, 7
    %s714 = smul.u32 %s710, 2
    %s715 = smul.u32 %s714, 8
    %s716 = sadd.s32 %s715, %s713
    %s717 = scalar_lea.vmem [#allocation5], %s716
    %v718 = vld [vmem:[%s717] ss:$8 sm:$0x3]
    %v720 = vperm.slane %v641, 0
    %v721 = vperm.slane %v641, 1
    %v725 = vperm.slane %v652, 0
    %v726 = vperm.slane %v652, 1
    %v730 = vperm.slane %v663, 0
    %v731 = vperm.slane %v663, 1
    %v735 = vperm.slane %v674, 0
    %v736 = vperm.slane %v674, 1
    %v740 = vperm.slane %v685, 0
    %v741 = vperm.slane %v685, 1
    %v745 = vperm.slane %v696, 0
    %v746 = vperm.slane %v696, 1
    %v750 = vperm.slane %v707, 0
    %v751 = vperm.slane %v707, 1
    %v755 = vperm.slane %v718, 0
    %v756 = vperm.slane %v718, 1
    %v759 = vsel %vm176, %v720, %v725
    %v760 = vsel %vm176, %v721, %v726
    %v761 = vsel %vm179, %v759, %v730
    %v762 = vsel %vm179, %v760, %v731
    %v763 = vsel %vm182, %v761, %v735
    %v764 = vsel %vm182, %v762, %v736
    %v765 = vsel %vm185, %v763, %v740
    %v766 = vsel %vm185, %v764, %v741
    %v767 = vsel %vm188, %v765, %v745
    %v768 = vsel %vm188, %v766, %v746
    %v769 = vsel %vm191, %v767, %v750
    %v770 = vsel %vm191, %v768, %v751
    %v771 = vsel %vm194, %v769, %v755
    %v772 = vsel %vm194, %v770, %v756
    %v773 = vadd.f32 %v629, %v771
    %v774 = vadd.f32 %v630, %v772
    %s775 = sadd.s32 %s41, 5
    %s776 = sld [smem:[#allocation3 + %s775]]
    %s777 = sshra.s32 %s776, 3
    %s778 = sand.u32 %s776, 7
    %s779 = sshra.s32 %s776, 3
    %s780 = sand.u32 %s776, 7
    %s781 = smul.u32 %s777, 2
    %s782 = smul.u32 %s781, 8
    %s783 = sadd.s32 %s782, %s780
    %s784 = scalar_lea.vmem [#allocation5], %s783
    %v785 = vld [vmem:[%s784] ss:$8 sm:$0x3]
    %s786 = sadd.s32 %s53, 5
    %s787 = sld [smem:[#allocation3 + %s786]]
    %s788 = sshra.s32 %s787, 3
    %s789 = sand.u32 %s787, 7
    %s790 = sshra.s32 %s787, 3
    %s791 = sand.u32 %s787, 7
    %s792 = smul.u32 %s788, 2
    %s793 = smul.u32 %s792, 8
    %s794 = sadd.s32 %s793, %s791
    %s795 = scalar_lea.vmem [#allocation5], %s794
    %v796 = vld [vmem:[%s795] ss:$8 sm:$0x3]
    %s797 = sadd.s32 %s65, 5
    %s798 = sld [smem:[#allocation3 + %s797]]
    %s799 = sshra.s32 %s798, 3
    %s800 = sand.u32 %s798, 7
    %s801 = sshra.s32 %s798, 3
    %s802 = sand.u32 %s798, 7
    %s803 = smul.u32 %s799, 2
    %s804 = smul.u32 %s803, 8
    %s805 = sadd.s32 %s804, %s802
    %s806 = scalar_lea.vmem [#allocation5], %s805
    %v807 = vld [vmem:[%s806] ss:$8 sm:$0x3]
    %s808 = sadd.s32 %s77, 5
    %s809 = sld [smem:[#allocation3 + %s808]]
    %s810 = sshra.s32 %s809, 3
    %s811 = sand.u32 %s809, 7
    %s812 = sshra.s32 %s809, 3
    %s813 = sand.u32 %s809, 7
    %s814 = smul.u32 %s810, 2
    %s815 = smul.u32 %s814, 8
    %s816 = sadd.s32 %s815, %s813
    %s817 = scalar_lea.vmem [#allocation5], %s816
    %v818 = vld [vmem:[%s817] ss:$8 sm:$0x3]
    %s819 = sadd.s32 %s89, 5
    %s820 = sld [smem:[#allocation3 + %s819]]
    %s821 = sshra.s32 %s820, 3
    %s822 = sand.u32 %s820, 7
    %s823 = sshra.s32 %s820, 3
    %s824 = sand.u32 %s820, 7
    %s825 = smul.u32 %s821, 2
    %s826 = smul.u32 %s825, 8
    %s827 = sadd.s32 %s826, %s824
    %s828 = scalar_lea.vmem [#allocation5], %s827
    %v829 = vld [vmem:[%s828] ss:$8 sm:$0x3]
    %s830 = sadd.s32 %s101, 5
    %s831 = sld [smem:[#allocation3 + %s830]]
    %s832 = sshra.s32 %s831, 3
    %s833 = sand.u32 %s831, 7
    %s834 = sshra.s32 %s831, 3
    %s835 = sand.u32 %s831, 7
    %s836 = smul.u32 %s832, 2
    %s837 = smul.u32 %s836, 8
    %s838 = sadd.s32 %s837, %s835
    %s839 = scalar_lea.vmem [#allocation5], %s838
    %v840 = vld [vmem:[%s839] ss:$8 sm:$0x3]
    %s841 = sadd.s32 %s113, 5
    %s842 = sld [smem:[#allocation3 + %s841]]
    %s843 = sshra.s32 %s842, 3
    %s844 = sand.u32 %s842, 7
    %s845 = sshra.s32 %s842, 3
    %s846 = sand.u32 %s842, 7
    %s847 = smul.u32 %s843, 2
    %s848 = smul.u32 %s847, 8
    %s849 = sadd.s32 %s848, %s846
    %s850 = scalar_lea.vmem [#allocation5], %s849
    %v851 = vld [vmem:[%s850] ss:$8 sm:$0x3]
    %s852 = sadd.s32 %s125, 5
    %s853 = sld [smem:[#allocation3 + %s852]]
    %s854 = sshra.s32 %s853, 3
    %s855 = sand.u32 %s853, 7
    %s856 = sshra.s32 %s853, 3
    %s857 = sand.u32 %s853, 7
    %s858 = smul.u32 %s854, 2
    %s859 = smul.u32 %s858, 8
    %s860 = sadd.s32 %s859, %s857
    %s861 = scalar_lea.vmem [#allocation5], %s860
    %v862 = vld [vmem:[%s861] ss:$8 sm:$0x3]
    %v864 = vperm.slane %v785, 0
    %v865 = vperm.slane %v785, 1
    %v869 = vperm.slane %v796, 0
    %v870 = vperm.slane %v796, 1
    %v874 = vperm.slane %v807, 0
    %v875 = vperm.slane %v807, 1
    %v879 = vperm.slane %v818, 0
    %v880 = vperm.slane %v818, 1
    %v884 = vperm.slane %v829, 0
    %v885 = vperm.slane %v829, 1
    %v889 = vperm.slane %v840, 0
    %v890 = vperm.slane %v840, 1
    %v894 = vperm.slane %v851, 0
    %v895 = vperm.slane %v851, 1
    %v899 = vperm.slane %v862, 0
    %v900 = vperm.slane %v862, 1
    %v903 = vsel %vm176, %v864, %v869
    %v904 = vsel %vm176, %v865, %v870
    %v905 = vsel %vm179, %v903, %v874
    %v906 = vsel %vm179, %v904, %v875
    %v907 = vsel %vm182, %v905, %v879
    %v908 = vsel %vm182, %v906, %v880
    %v909 = vsel %vm185, %v907, %v884
    %v910 = vsel %vm185, %v908, %v885
    %v911 = vsel %vm188, %v909, %v889
    %v912 = vsel %vm188, %v910, %v890
    %v913 = vsel %vm191, %v911, %v894
    %v914 = vsel %vm191, %v912, %v895
    %v915 = vsel %vm194, %v913, %v899
    %v916 = vsel %vm194, %v914, %v900
    %v917 = vadd.f32 %v773, %v915
    %v918 = vadd.f32 %v774, %v916
    %s919 = sadd.s32 %s41, 6
    %s920 = sld [smem:[#allocation3 + %s919]]
    %s921 = sshra.s32 %s920, 3
    %s922 = sand.u32 %s920, 7
    %s923 = sshra.s32 %s920, 3
    %s924 = sand.u32 %s920, 7
    %s925 = smul.u32 %s921, 2
    %s926 = smul.u32 %s925, 8
    %s927 = sadd.s32 %s926, %s924
    %s928 = scalar_lea.vmem [#allocation5], %s927
    %v929 = vld [vmem:[%s928] ss:$8 sm:$0x3]
    %s930 = sadd.s32 %s53, 6
    %s931 = sld [smem:[#allocation3 + %s930]]
    %s932 = sshra.s32 %s931, 3
    %s933 = sand.u32 %s931, 7
    %s934 = sshra.s32 %s931, 3
    %s935 = sand.u32 %s931, 7
    %s936 = smul.u32 %s932, 2
    %s937 = smul.u32 %s936, 8
    %s938 = sadd.s32 %s937, %s935
    %s939 = scalar_lea.vmem [#allocation5], %s938
    %v940 = vld [vmem:[%s939] ss:$8 sm:$0x3]
    %s941 = sadd.s32 %s65, 6
    %s942 = sld [smem:[#allocation3 + %s941]]
    %s943 = sshra.s32 %s942, 3
    %s944 = sand.u32 %s942, 7
    %s945 = sshra.s32 %s942, 3
    %s946 = sand.u32 %s942, 7
    %s947 = smul.u32 %s943, 2
    %s948 = smul.u32 %s947, 8
    %s949 = sadd.s32 %s948, %s946
    %s950 = scalar_lea.vmem [#allocation5], %s949
    %v951 = vld [vmem:[%s950] ss:$8 sm:$0x3]
    %s952 = sadd.s32 %s77, 6
    %s953 = sld [smem:[#allocation3 + %s952]]
    %s954 = sshra.s32 %s953, 3
    %s955 = sand.u32 %s953, 7
    %s956 = sshra.s32 %s953, 3
    %s957 = sand.u32 %s953, 7
    %s958 = smul.u32 %s954, 2
    %s959 = smul.u32 %s958, 8
    %s960 = sadd.s32 %s959, %s957
    %s961 = scalar_lea.vmem [#allocation5], %s960
    %v962 = vld [vmem:[%s961] ss:$8 sm:$0x3]
    %s963 = sadd.s32 %s89, 6
    %s964 = sld [smem:[#allocation3 + %s963]]
    %s965 = sshra.s32 %s964, 3
    %s966 = sand.u32 %s964, 7
    %s967 = sshra.s32 %s964, 3
    %s968 = sand.u32 %s964, 7
    %s969 = smul.u32 %s965, 2
    %s970 = smul.u32 %s969, 8
    %s971 = sadd.s32 %s970, %s968
    %s972 = scalar_lea.vmem [#allocation5], %s971
    %v973 = vld [vmem:[%s972] ss:$8 sm:$0x3]
    %s974 = sadd.s32 %s101, 6
    %s975 = sld [smem:[#allocation3 + %s974]]
    %s976 = sshra.s32 %s975, 3
    %s977 = sand.u32 %s975, 7
    %s978 = sshra.s32 %s975, 3
    %s979 = sand.u32 %s975, 7
    %s980 = smul.u32 %s976, 2
    %s981 = smul.u32 %s980, 8
    %s982 = sadd.s32 %s981, %s979
    %s983 = scalar_lea.vmem [#allocation5], %s982
    %v984 = vld [vmem:[%s983] ss:$8 sm:$0x3]
    %s985 = sadd.s32 %s113, 6
    %s986 = sld [smem:[#allocation3 + %s985]]
    %s987 = sshra.s32 %s986, 3
    %s988 = sand.u32 %s986, 7
    %s989 = sshra.s32 %s986, 3
    %s990 = sand.u32 %s986, 7
    %s991 = smul.u32 %s987, 2
    %s992 = smul.u32 %s991, 8
    %s993 = sadd.s32 %s992, %s990
    %s994 = scalar_lea.vmem [#allocation5], %s993
    %v995 = vld [vmem:[%s994] ss:$8 sm:$0x3]
    %s996 = sadd.s32 %s125, 6
    %s997 = sld [smem:[#allocation3 + %s996]]
    %s998 = sshra.s32 %s997, 3
    %s999 = sand.u32 %s997, 7
    %s1000 = sshra.s32 %s997, 3
    %s1001 = sand.u32 %s997, 7
    %s1002 = smul.u32 %s998, 2
    %s1003 = smul.u32 %s1002, 8
    %s1004 = sadd.s32 %s1003, %s1001
    %s1005 = scalar_lea.vmem [#allocation5], %s1004
    %v1006 = vld [vmem:[%s1005] ss:$8 sm:$0x3]
    %v1008 = vperm.slane %v929, 0
    %v1009 = vperm.slane %v929, 1
    %v1013 = vperm.slane %v940, 0
    %v1014 = vperm.slane %v940, 1
    %v1018 = vperm.slane %v951, 0
    %v1019 = vperm.slane %v951, 1
    %v1023 = vperm.slane %v962, 0
    %v1024 = vperm.slane %v962, 1
    %v1028 = vperm.slane %v973, 0
    %v1029 = vperm.slane %v973, 1
    %v1033 = vperm.slane %v984, 0
    %v1034 = vperm.slane %v984, 1
    %v1038 = vperm.slane %v995, 0
    %v1039 = vperm.slane %v995, 1
    %v1043 = vperm.slane %v1006, 0
    %v1044 = vperm.slane %v1006, 1
    %v1047 = vsel %vm176, %v1008, %v1013
    %v1048 = vsel %vm176, %v1009, %v1014
    %v1049 = vsel %vm179, %v1047, %v1018
    %v1050 = vsel %vm179, %v1048, %v1019
    %v1051 = vsel %vm182, %v1049, %v1023
    %v1052 = vsel %vm182, %v1050, %v1024
    %v1053 = vsel %vm185, %v1051, %v1028
    %v1054 = vsel %vm185, %v1052, %v1029
    %v1055 = vsel %vm188, %v1053, %v1033
    %v1056 = vsel %vm188, %v1054, %v1034
    %v1057 = vsel %vm191, %v1055, %v1038
    %v1058 = vsel %vm191, %v1056, %v1039
    %v1059 = vsel %vm194, %v1057, %v1043
    %v1060 = vsel %vm194, %v1058, %v1044
    %v1061 = vadd.f32 %v917, %v1059
    %v1062 = vadd.f32 %v918, %v1060
    %s1063 = sadd.s32 %s41, 7
    %s1064 = sld [smem:[#allocation3 + %s1063]]
    %s1065 = sshra.s32 %s1064, 3
    %s1066 = sand.u32 %s1064, 7
    %s1067 = sshra.s32 %s1064, 3
    %s1068 = sand.u32 %s1064, 7
    %s1069 = smul.u32 %s1065, 2
    %s1070 = smul.u32 %s1069, 8
    %s1071 = sadd.s32 %s1070, %s1068
    %s1072 = scalar_lea.vmem [#allocation5], %s1071
    %v1073 = vld [vmem:[%s1072] ss:$8 sm:$0x3]
    %s1074 = sadd.s32 %s53, 7
    %s1075 = sld [smem:[#allocation3 + %s1074]]
    %s1076 = sshra.s32 %s1075, 3
    %s1077 = sand.u32 %s1075, 7
    %s1078 = sshra.s32 %s1075, 3
    %s1079 = sand.u32 %s1075, 7
    %s1080 = smul.u32 %s1076, 2
    %s1081 = smul.u32 %s1080, 8
    %s1082 = sadd.s32 %s1081, %s1079
    %s1083 = scalar_lea.vmem [#allocation5], %s1082
    %v1084 = vld [vmem:[%s1083] ss:$8 sm:$0x3]
    %s1085 = sadd.s32 %s65, 7
    %s1086 = sld [smem:[#allocation3 + %s1085]]
    %s1087 = sshra.s32 %s1086, 3
    %s1088 = sand.u32 %s1086, 7
    %s1089 = sshra.s32 %s1086, 3
    %s1090 = sand.u32 %s1086, 7
    %s1091 = smul.u32 %s1087, 2
    %s1092 = smul.u32 %s1091, 8
    %s1093 = sadd.s32 %s1092, %s1090
    %s1094 = scalar_lea.vmem [#allocation5], %s1093
    %v1095 = vld [vmem:[%s1094] ss:$8 sm:$0x3]
    %s1096 = sadd.s32 %s77, 7
    %s1097 = sld [smem:[#allocation3 + %s1096]]
    %s1098 = sshra.s32 %s1097, 3
    %s1099 = sand.u32 %s1097, 7
    %s1100 = sshra.s32 %s1097, 3
    %s1101 = sand.u32 %s1097, 7
    %s1102 = smul.u32 %s1098, 2
    %s1103 = smul.u32 %s1102, 8
    %s1104 = sadd.s32 %s1103, %s1101
    %s1105 = scalar_lea.vmem [#allocation5], %s1104
    %v1106 = vld [vmem:[%s1105] ss:$8 sm:$0x3]
    %s1107 = sadd.s32 %s89, 7
    %s1108 = sld [smem:[#allocation3 + %s1107]]
    %s1109 = sshra.s32 %s1108, 3
    %s1110 = sand.u32 %s1108, 7
    %s1111 = sshra.s32 %s1108, 3
    %s1112 = sand.u32 %s1108, 7
    %s1113 = smul.u32 %s1109, 2
    %s1114 = smul.u32 %s1113, 8
    %s1115 = sadd.s32 %s1114, %s1112
    %s1116 = scalar_lea.vmem [#allocation5], %s1115
    %v1117 = vld [vmem:[%s1116] ss:$8 sm:$0x3]
    %s1118 = sadd.s32 %s101, 7
    %s1119 = sld [smem:[#allocation3 + %s1118]]
    %s1120 = sshra.s32 %s1119, 3
    %s1121 = sand.u32 %s1119, 7
    %s1122 = sshra.s32 %s1119, 3
    %s1123 = sand.u32 %s1119, 7
    %s1124 = smul.u32 %s1120, 2
    %s1125 = smul.u32 %s1124, 8
    %s1126 = sadd.s32 %s1125, %s1123
    %s1127 = scalar_lea.vmem [#allocation5], %s1126
    %v1128 = vld [vmem:[%s1127] ss:$8 sm:$0x3]
    %s1129 = sadd.s32 %s113, 7
    %s1130 = sld [smem:[#allocation3 + %s1129]]
    %s1131 = sshra.s32 %s1130, 3
    %s1132 = sand.u32 %s1130, 7
    %s1133 = sshra.s32 %s1130, 3
    %s1134 = sand.u32 %s1130, 7
    %s1135 = smul.u32 %s1131, 2
    %s1136 = smul.u32 %s1135, 8
    %s1137 = sadd.s32 %s1136, %s1134
    %s1138 = scalar_lea.vmem [#allocation5], %s1137
    %v1139 = vld [vmem:[%s1138] ss:$8 sm:$0x3]
    %s1140 = sadd.s32 %s125, 7
    %s1141 = sld [smem:[#allocation3 + %s1140]]
    %s1142 = sshra.s32 %s1141, 3
    %s1143 = sand.u32 %s1141, 7
    %s1144 = sshra.s32 %s1141, 3
    %s1145 = sand.u32 %s1141, 7
    %s1146 = smul.u32 %s1142, 2
    %s1147 = smul.u32 %s1146, 8
    %s1148 = sadd.s32 %s1147, %s1145
    %s1149 = scalar_lea.vmem [#allocation5], %s1148
    %v1150 = vld [vmem:[%s1149] ss:$8 sm:$0x3]
    %v1152 = vperm.slane %v1073, 0
    %v1153 = vperm.slane %v1073, 1
    %v1157 = vperm.slane %v1084, 0
    %v1158 = vperm.slane %v1084, 1
    %v1162 = vperm.slane %v1095, 0
    %v1163 = vperm.slane %v1095, 1
    %v1167 = vperm.slane %v1106, 0
    %v1168 = vperm.slane %v1106, 1
    %v1172 = vperm.slane %v1117, 0
    %v1173 = vperm.slane %v1117, 1
    %v1177 = vperm.slane %v1128, 0
    %v1178 = vperm.slane %v1128, 1
    %v1182 = vperm.slane %v1139, 0
    %v1183 = vperm.slane %v1139, 1
    %v1187 = vperm.slane %v1150, 0
    %v1188 = vperm.slane %v1150, 1
    %v1191 = vsel %vm176, %v1152, %v1157
    %v1192 = vsel %vm176, %v1153, %v1158
    %v1193 = vsel %vm179, %v1191, %v1162
    %v1194 = vsel %vm179, %v1192, %v1163
    %v1195 = vsel %vm182, %v1193, %v1167
    %v1196 = vsel %vm182, %v1194, %v1168
    %v1197 = vsel %vm185, %v1195, %v1172
    %v1198 = vsel %vm185, %v1196, %v1173
    %v1199 = vsel %vm188, %v1197, %v1177
    %v1200 = vsel %vm188, %v1198, %v1178
    %v1201 = vsel %vm191, %v1199, %v1182
    %v1202 = vsel %vm191, %v1200, %v1183
    %v1203 = vsel %vm194, %v1201, %v1187
    %v1204 = vsel %vm194, %v1202, %v1188
    %v1205 = vadd.f32 %v1061, %v1203
    %v1206 = vadd.f32 %v1062, %v1204
    %v1207 = vmul.f32 %v1205, 0.125
    %v1208 = vmul.f32 %v1206, 0.125
    %v1209 = vld [vmem:[%s2] sm:$0xff]
    %v1210 = vld [vmem:[%s2 + $0x8] sm:$0xff]
    %v1211 = vld [vmem:[%s2 + $0x10] sm:$0xff]
    %v1212 = vld [vmem:[%s2 + $0x18] sm:$0xff]
    %v1213 = vld [vmem:[%s2 + $0x20] sm:$0xff]
    %v1214 = vld [vmem:[%s2 + $0x28] sm:$0xff]
    %v1215 = vld [vmem:[%s2 + $0x30] sm:$0xff]
    %v1216 = vld [vmem:[%s2 + $0x38] sm:$0xff]
    %v1217 = vld [vmem:[%s2 + $0x40] sm:$0xff]
    %v1218 = vld [vmem:[%s2 + $0x48] sm:$0xff]
    %v1219 = vld [vmem:[%s2 + $0x50] sm:$0xff]
    %v1220 = vld [vmem:[%s2 + $0x58] sm:$0xff]
    %v1221 = vld [vmem:[%s2 + $0x60] sm:$0xff]
    %v1222 = vld [vmem:[%s2 + $0x68] sm:$0xff]
    %v1223 = vld [vmem:[%s2 + $0x70] sm:$0xff]
    %v1224 = vld [vmem:[%s2 + $0x78] sm:$0xff]
    %v1225 = vld [vmem:[%s2 + $0x80] sm:$0xff]
    %v1226 = vld [vmem:[%s2 + $0x88] sm:$0xff]
    %v1227 = vld [vmem:[%s2 + $0x90] sm:$0xff]
    %v1228 = vld [vmem:[%s2 + $0x98] sm:$0xff]
    %v1229 = vld [vmem:[%s2 + $0xa0] sm:$0xff]
    %v1230 = vld [vmem:[%s2 + $0xa8] sm:$0xff]
    %v1231 = vld [vmem:[%s2 + $0xb0] sm:$0xff]
    %v1232 = vld [vmem:[%s2 + $0xb8] sm:$0xff]
    %v1233 = vld [vmem:[%s2 + $0xc0] sm:$0xff]
    %v1234 = vld [vmem:[%s2 + $0xc8] sm:$0xff]
    %v1235 = vld [vmem:[%s2 + $0xd0] sm:$0xff]
    %v1236 = vld [vmem:[%s2 + $0xd8] sm:$0xff]
    %v1237 = vld [vmem:[%s2 + $0xe0] sm:$0xff]
    %v1238 = vld [vmem:[%s2 + $0xe8] sm:$0xff]
    %v1239 = vld [vmem:[%s2 + $0xf0] sm:$0xff]
    %v1240 = vld [vmem:[%s2 + $0xf8] sm:$0xff]
    %s1241 = sld [smem:[#allocation4]]
    %v1242 = vstv %s1241
    %1243 = vmatpush.msra.mxu0 %v1224
    %1244 = vmatpush.msra.mxu0 %v1223
    %1245 = vmatpush.msra.mxu0 %v1222
    %1246 = vmatpush.msra.mxu0 %v1221
    %1247 = vmatpush.msra.mxu0 %v1220
    %1248 = vmatpush.msra.mxu0 %v1219
    %1249 = vmatpush.msra.mxu0 %v1218
    %1250 = vmatpush.msra.mxu0 %v1217
    %1251 = vmatpush.msra.mxu0 %v1216
    %1252 = vmatpush.msra.mxu0 %v1215
    %1253 = vmatpush.msra.mxu0 %v1214
    %1254 = vmatpush.msra.mxu0 %v1213
    %1255 = vmatpush.msra.mxu0 %v1212
    %1256 = vmatpush.msra.mxu0 %v1211
    %1257 = vmatpush.msra.mxu0 %v1210
    %1258 = vmatpush.msra.mxu0 %v1209
    %1259 = vmatmul.f32.gmra.mxu0 %v1207
    %v1260 = vpop.f32.mrf.mxu0
    %v1261 = vadd.f32 %v1242, %v1260
    %1262 = vdwg.mxu0
    %1263 = vmatpush.msra.mxu0 %v1240
    %1264 = vmatpush.msra.mxu0 %v1239
    %1265 = vmatpush.msra.mxu0 %v1238
    %1266 = vmatpush.msra.mxu0 %v1237
    %1267 = vmatpush.msra.mxu0 %v1236
    %1268 = vmatpush.msra.mxu0 %v1235
    %1269 = vmatpush.msra.mxu0 %v1234
    %1270 = vmatpush.msra.mxu0 %v1233
    %1271 = vmatpush.msra.mxu0 %v1232
    %1272 = vmatpush.msra.mxu0 %v1231
    %1273 = vmatpush.msra.mxu0 %v1230
    %1274 = vmatpush.msra.mxu0 %v1229
    %1275 = vmatpush.msra.mxu0 %v1228
    %1276 = vmatpush.msra.mxu0 %v1227
    %1277 = vmatpush.msra.mxu0 %v1226
    %1278 = vmatpush.msra.mxu0 %v1225
    %1279 = vmatmul.f32.gmra.mxu0 %v1208
    %v1280 = vpop.f32.mrf.mxu0
    %v1281 = vadd.f32 %v1261, %v1280
    %1282 = vdwg.mxu0
    %vm1283 = vcmask 7168
    %1284 = vst.msk [vmem:[%s4] sm:$0xff] %vm1283, %v1281
    // Predicated region
    $region18: #{tpu_custom_call.1} parent=1 // pred_check
      _
    $region19: #{tpu_custom_call.1} parent=1 // pred_check_branch
      %1286 = sbr.rel (0) target = $region21
    $region20: #{tpu_custom_call.1} parent=1 // pred_region
      _
    $region21: #{tpu_custom_call.1} parent=1 // pred_fallthru
      _
    // Predicated region
    $region22: #{tpu_custom_call.1} parent=1 // pred_check
      _
    $region23: #{tpu_custom_call.1} parent=1 // pred_check_branch
      %1288 = sbr.rel (0) target = $region25
    $region24: #{tpu_custom_call.1} parent=1 // pred_region
      _
    $region25: #{tpu_custom_call.1} parent=1 // pred_fallthru
      _
    %1289 = vsyncpa [#allocation6], 1

</llo_original>
